<compile_context>
chip_gen: v7x
topology: tpu7x:2x2x1
jax: 0.10.0
libtpu: 0.0.40
codegen_flags: <defaults>
</compile_context>

<pallas_src>
import functools

import jax
import jax.numpy as jnp
import numpy as np
from jax.experimental import pallas as pl
from jax.experimental.pallas import tpu as pltpu


def _rmsnorm(x):
    # RMSNorm from the spec: x / sqrt(mean(x**2, -1)); no eps, no affine.
    return x * jax.lax.rsqrt(jnp.mean(x * x, axis=-1, keepdims=True))


def block5_kernel(x_ref, wqkv_ref, wo_ref, bo_ref, w1_ref, b1_ref,
                  w2_ref, b2_ref, o_ref, *, num_heads, seq_len, compute_dtype):
    x = x_ref[...]                        # (rows, dm) f32, rows = block_b * T
    rows, dm = x.shape
    T = seq_len
    bblk = rows // T
    dk = dm // num_heads

    # ---- sublayer 1: x + W_o(MHA(rmsnorm(x))) ----
    h1 = _rmsnorm(x)

    # Fused QKV projection: one (rows, dm) @ (dm, 3*dm) MXU matmul.
    qkv = jnp.dot(h1.astype(compute_dtype), wqkv_ref[...],
                  preferred_element_type=jnp.float32)           # (rows, 3*dm)
    # rectify=True heads: ReLU on q and k (1/sqrt(dk) already folded into W_q)
    q = jnp.maximum(qkv[:, 0 * dm:1 * dm], 0.0)
    k = jnp.maximum(qkv[:, 1 * dm:2 * dm], 0.0)
    v = qkv[:, 2 * dm:3 * dm]

    # causal mask hoisted out of the head loop (TPU needs >= 2-D iota)
    row_i = jax.lax.broadcasted_iota(jnp.int32, (T, T), 0)
    col_i = jax.lax.broadcasted_iota(jnp.int32, (T, T), 1)
    causal = (row_i >= col_i)[None]       # (1, T, T), broadcast over sequences

    head_ctx = []
    for hd in range(num_heads):           # static loop; work inside is batched
        sl = slice(hd * dk, (hd + 1) * dk)
        qh = q[:, sl].reshape(bblk, T, dk).astype(compute_dtype)
        kh = k[:, sl].reshape(bblk, T, dk).astype(compute_dtype)
        vh = v[:, sl].reshape(bblk, T, dk).astype(compute_dtype)

        s = jnp.einsum("bqd,bkd->bqk", qh, kh,
                       preferred_element_type=jnp.float32)      # (bblk, T, T)
        s = jnp.where(causal, s, -jnp.inf)
        m = jnp.max(s, axis=-1, keepdims=True)
        e = jnp.exp(s - m)                                      # masked -> 0
        denom = jnp.sum(e, axis=-1, keepdims=True)
        p = e * pl.reciprocal(denom, approx=True)               # EUP divide
        # attention dropout: identity in eval mode

        ctx = jnp.einsum("bqk,bkd->bqd", p.astype(compute_dtype), vh,
                         preferred_element_type=jnp.float32)    # (bblk, T, dk)
        head_ctx.append(ctx.reshape(rows, dk))

    mha = jnp.concatenate(head_ctx, axis=-1)                    # (rows, dm)
    attn = jnp.dot(mha.astype(compute_dtype), wo_ref[...],
                   preferred_element_type=jnp.float32) + bo_ref[...]
    x1 = x + attn                                               # residual

    # ---- sublayer 2: x1 + FFN(rmsnorm(x1)) ----
    h2 = _rmsnorm(x1)
    hid = jnp.maximum(
        jnp.dot(h2.astype(compute_dtype), w1_ref[...],
                preferred_element_type=jnp.float32) + b1_ref[...], 0.0)
    ffn = jnp.dot(hid.astype(compute_dtype), w2_ref[...],
                  preferred_element_type=jnp.float32) + b2_ref[...]
    o_ref[...] = (x1 + ffn).astype(o_ref.dtype)


def _pick_block_b(B, T, max_rows=512):
    """Sequences per grid step: fill the MXU M dim (rows = block_b*T), keep
    rows a multiple of 8, prefer >= 2 grid steps so both v7x TCs get work."""
    cands = [d for d in range(1, B + 1)
             if B % d == 0 and d * T <= max_rows and (d * T) % 8 == 0]
    if not cands:
        return B                     # single step; block == full array (legal)
    multi = [d for d in cands if B // d >= 2]
    return max(multi) if multi else max(cands)


def block5_forward(x, params, num_heads, *, compute_dtype=jnp.float32,
                   block_b=None):
    B, T, dm = x.shape
    dk = dm // num_heads
    assert dk * num_heads == dm

    if block_b is None:
        block_b = _pick_block_b(B, T)
    assert B % block_b == 0
    grid_b = B // block_b
    rows = block_b * T

    # Fuse per-head projections into one (dm, 3*dm) weight; fold 1/sqrt(dk)
    # into W_q (ReLU commutes with a positive scale).
    scale = dk ** -0.5
    wq_full = jnp.transpose(params["wq"], (1, 0, 2)).reshape(dm, dm) * scale
    wk_full = jnp.transpose(params["wk"], (1, 0, 2)).reshape(dm, dm)
    wv_full = jnp.transpose(params["wv"], (1, 0, 2)).reshape(dm, dm)
    wqkv = jnp.concatenate([wq_full, wk_full, wv_full], axis=-1)

    cd = compute_dtype
    wqkv = wqkv.astype(cd)
    wo = params["wo"].astype(cd)
    w1 = params["w1"].astype(cd)
    w2 = params["w2"].astype(cd)
    # biases as (1, N): clean (sublane, lane) layout, no in-kernel broadcasts
    bo = params["bo"].reshape(1, dm).astype(jnp.float32)
    b1 = params["b1"].reshape(1, 4 * dm).astype(jnp.float32)
    b2 = params["b2"].reshape(1, dm).astype(jnp.float32)

    # flatten batch/seq wrapper-side (free, contiguous): kernel sees 2-D slabs
    x2d = x.reshape(B * T, dm)

    kernel = functools.partial(block5_kernel, num_heads=num_heads,
                               seq_len=T, compute_dtype=cd)

    const = lambda shape: pl.BlockSpec(shape, lambda i: (0, 0))

    out2d = pl.pallas_call(
        kernel,
        out_shape=jax.ShapeDtypeStruct((B * T, dm), jnp.float32),
        grid_spec=pltpu.PrefetchScalarGridSpec(
            num_scalar_prefetch=0,
            grid=(grid_b,),
            in_specs=[
                pl.BlockSpec((rows, dm), lambda i: (i, 0)),    # x slab
                const((dm, 3 * dm)),                           # fused W_qkv
                const((dm, dm)),                               # W_o
                const((1, dm)),                                # b_o
                const((dm, 4 * dm)),                           # ffn W1
                const((1, 4 * dm)),                            # ffn b1
                const((4 * dm, dm)),                           # ffn W2
                const((1, dm)),                                # ffn b2
            ],
            out_specs=pl.BlockSpec((rows, dm), lambda i: (i, 0)),
        ),
        compiler_params=pltpu.CompilerParams(
            dimension_semantics=("parallel",),
            vmem_limit_bytes=64 * 1024 * 1024,    # also fits v7x's 64 MiB VMEM
        ),
    )(x2d, wqkv, wo, bo, w1, b1, w2, b2)
    return out2d.reshape(B, T, dm)


def block5_reference(x, params, num_heads):
    """Pure-JAX mirror of the PyTorch Block5 forward (eval mode)."""
    def rms(a):
        return a / jnp.sqrt(jnp.mean(a ** 2, axis=-1, keepdims=True))

    T = x.shape[1]
    h1 = rms(x)
    mask = jnp.tril(jnp.ones((T, T), bool))
    heads = []
    for hd in range(num_heads):
        q = jnp.maximum(h1 @ params["wq"][hd], 0.0)   # rectify=True
        k = jnp.maximum(h1 @ params["wk"][hd], 0.0)
        v = h1 @ params["wv"][hd]
        wei = q @ jnp.swapaxes(k, -1, -2) * (k.shape[-1] ** -0.5)
        wei = jnp.where(mask, wei, -jnp.inf)
        wei = jax.nn.softmax(wei, axis=-1)
        heads.append(wei @ v)
    mha = jnp.concatenate(heads, axis=-1)
    x1 = x + (mha @ params["wo"] + params["bo"])
    h2 = rms(x1)
    ffn = (jnp.maximum(h2 @ params["w1"] + params["b1"], 0.0) @ params["w2"]
           + params["b2"])
    return x1 + ffn


def init_params(key, dm, num_heads):
    dk = dm // num_heads
    ks = jax.random.split(key, 10)
    s = 0.05
    return {
        "wq": s * jax.random.normal(ks[0], (num_heads, dm, dk), jnp.float32),
        "wk": s * jax.random.normal(ks[1], (num_heads, dm, dk), jnp.float32),
        "wv": s * jax.random.normal(ks[2], (num_heads, dm, dk), jnp.float32),
        "wo": s * jax.random.normal(ks[3], (dm, dm), jnp.float32),
        "bo": s * jax.random.normal(ks[4], (dm,), jnp.float32),
        "w1": s * jax.random.normal(ks[5], (dm, 4 * dm), jnp.float32),
        "b1": s * jax.random.normal(ks[6], (4 * dm,), jnp.float32),
        "w2": s * jax.random.normal(ks[7], (4 * dm, dm), jnp.float32),
        "b2": s * jax.random.normal(ks[8], (dm,), jnp.float32),
    }


if __name__ == "__main__":
    B, T, dm, h = 2, 8, 32, 4
    key = jax.random.PRNGKey(0)
    kx, kx2, kp = jax.random.split(key, 3)
    x = jax.random.normal(kx, (B, T, dm), jnp.float32)
    params = init_params(kp, dm, h)

    ref = block5_reference(x, params, h)

    # f32 MXU path (default) -- tight check
    out = jax.block_until_ready(block5_forward(x, params, h))
    assert out.shape == (B, T, dm)
    assert np.allclose(np.asarray(out), np.asarray(ref), rtol=3e-3, atol=3e-3)

    # bf16 MXU-operand path (v6e/v7x optimization), f32 accumulation
    out_bf16 = jax.block_until_ready(
        block5_forward(x, params, h, compute_dtype=jnp.bfloat16))
    assert np.allclose(np.asarray(out_bf16), np.asarray(ref),
                       rtol=5e-2, atol=5e-2)

    # exercise multi-sequence batch blocking (block_b > 1, 2 grid steps)
    B2 = 8
    x2 = jax.random.normal(kx2, (B2, T, dm), jnp.float32)
    out2 = jax.block_until_ready(block5_forward(x2, params, h))
    ref2 = block5_reference(x2, params, h)
    assert np.allclose(np.asarray(out2), np.asarray(ref2), rtol=3e-3, atol=3e-3)

    print("KERNEL_OK")
</pallas_src>

<mosaic_0001>
module attributes {stable_mosaic.version = 11 : i64} {
  func.func @block5_kernel(%arg0: i32, %arg1: memref<8x32xf32, #tpu.memory_space<vmem>>, %arg2: memref<32x96xf32, #tpu.memory_space<vmem>>, %arg3: memref<32x32xf32, #tpu.memory_space<vmem>>, %arg4: memref<1x32xf32, #tpu.memory_space<vmem>>, %arg5: memref<32x128xf32, #tpu.memory_space<vmem>>, %arg6: memref<1x128xf32, #tpu.memory_space<vmem>>, %arg7: memref<128x32xf32, #tpu.memory_space<vmem>>, %arg8: memref<1x32xf32, #tpu.memory_space<vmem>>, %arg9: memref<8x32xf32, #tpu.memory_space<vmem>>) attributes {dimension_semantics = [#tpu.dimension_semantics<parallel>], iteration_bounds = array<i64: 2>, scalar_prefetch = 0 : i64, scratch_operands = 0 : i64, tpu.core_type = #tpu.core_type<tc>, window_params = [{transform_indices = @transform_0, window_bounds = array<i64: 8, 32>}, {pipeline_mode = #tpu.pipeline_mode<synchronous>, transform_indices = @transform_1, window_bounds = array<i64: 32, 96>}, {pipeline_mode = #tpu.pipeline_mode<synchronous>, transform_indices = @transform_2, window_bounds = array<i64: 32, 32>}, {pipeline_mode = #tpu.pipeline_mode<synchronous>, transform_indices = @transform_3, window_bounds = array<i64: 1, 32>}, {pipeline_mode = #tpu.pipeline_mode<synchronous>, transform_indices = @transform_4, window_bounds = array<i64: 32, 128>}, {pipeline_mode = #tpu.pipeline_mode<synchronous>, transform_indices = @transform_5, window_bounds = array<i64: 1, 128>}, {pipeline_mode = #tpu.pipeline_mode<synchronous>, transform_indices = @transform_6, window_bounds = array<i64: 128, 32>}, {pipeline_mode = #tpu.pipeline_mode<synchronous>, transform_indices = @transform_7, window_bounds = array<i64: 1, 32>}, {transform_indices = @transform_8, window_bounds = array<i64: 8, 32>}]} {
    %c0 = arith.constant 0 : index
    %c0_0 = arith.constant 0 : index
    %0 = vector.load %arg1[%c0, %c0_0] : memref<8x32xf32, #tpu.memory_space<vmem>>, vector<8x32xf32>
    %1 = arith.mulf %0, %0 : vector<8x32xf32>
    %cst = arith.constant dense<0.000000e+00> : vector<8xf32>
    %2 = vector.multi_reduction <add>, %1, %cst [1] : vector<8x32xf32> to vector<8xf32>
    %3 = vector.shape_cast %2 : vector<8xf32> to vector<8x1xf32>
    %cst_1 = arith.constant 3.200000e+01 : f32
    %4 = vector.broadcast %cst_1 : f32 to vector<8x1xf32>
    %5 = arith.divf %3, %4 : vector<8x1xf32>
    %6 = math.rsqrt %5 : vector<8x1xf32>
    %7 = vector.broadcast %6 : vector<8x1xf32> to vector<8x32xf32>
    %8 = arith.mulf %0, %7 : vector<8x32xf32>
    %c0_2 = arith.constant 0 : index
    %c0_3 = arith.constant 0 : index
    %9 = vector.load %arg2[%c0_2, %c0_3] : memref<32x96xf32, #tpu.memory_space<vmem>>, vector<32x96xf32>
    %cst_4 = arith.constant dense<0.000000e+00> : vector<8x96xf32>
    %10 = tpu.matmul %8, %9, %cst_4 {dimension_numbers = #tpu.dot_dimension_numbers<[1], [0], [0], [1], [0, 0, 1, 1], [], []>} : vector<8x32xf32>, vector<32x96xf32>, vector<8x96xf32> -> vector<8x96xf32>
    %11 = vector.extract_strided_slice %10 {offsets = [0, 0], sizes = [8, 32], strides = [1, 1]} : vector<8x96xf32> to vector<8x32xf32>
    %cst_5 = arith.constant 0.000000e+00 : f32
    %12 = vector.broadcast %cst_5 : f32 to vector<8x32xf32>
    %13 = arith.maximumf %11, %12 : vector<8x32xf32>
    %14 = vector.extract_strided_slice %10 {offsets = [0, 32], sizes = [8, 32], strides = [1, 1]} : vector<8x96xf32> to vector<8x32xf32>
    %cst_6 = arith.constant 0.000000e+00 : f32
    %15 = vector.broadcast %cst_6 : f32 to vector<8x32xf32>
    %16 = arith.maximumf %14, %15 : vector<8x32xf32>
    %17 = vector.extract_strided_slice %10 {offsets = [0, 64], sizes = [8, 32], strides = [1, 1]} : vector<8x96xf32> to vector<8x32xf32>
    %18 = tpu.iota {dimensions = array<i32: 0>} : vector<8x8xi32>
    %19 = tpu.iota {dimensions = array<i32: 1>} : vector<8x8xi32>
    %20 = arith.cmpi sge, %18, %19 : vector<8x8xi32>
    %21 = vector.shape_cast %20 : vector<8x8xi1> to vector<1x8x8xi1>
    %22 = vector.extract_strided_slice %13 {offsets = [0, 0], sizes = [8, 8], strides = [1, 1]} : vector<8x32xf32> to vector<8x8xf32>
    %23 = vector.shape_cast %22 : vector<8x8xf32> to vector<1x8x8xf32>
    %24 = vector.extract_strided_slice %16 {offsets = [0, 0], sizes = [8, 8], strides = [1, 1]} : vector<8x32xf32> to vector<8x8xf32>
    %25 = vector.shape_cast %24 : vector<8x8xf32> to vector<1x8x8xf32>
    %26 = vector.extract_strided_slice %17 {offsets = [0, 0], sizes = [8, 8], strides = [1, 1]} : vector<8x32xf32> to vector<8x8xf32>
    %27 = vector.shape_cast %26 : vector<8x8xf32> to vector<1x8x8xf32>
    "tpu.trace_start"() <{level = 10 : i32, message = "bqd,bkd->bqk"}> : () -> ()
    %cst_7 = arith.constant dense<0.000000e+00> : vector<1x8x8xf32>
    %28 = tpu.matmul %23, %25, %cst_7 {dimension_numbers = #tpu.dot_dimension_numbers<[2], [2], [1], [1], [0, 0, 0, 1, 1, 1], [0], [0]>} : vector<1x8x8xf32>, vector<1x8x8xf32>, vector<1x8x8xf32> -> vector<1x8x8xf32>
    %cst_8 = arith.constant 0xFF800000 : f32
    "tpu.trace_stop"() : () -> ()
    %29 = vector.broadcast %cst_8 : f32 to vector<1x8x8xf32>
    %30 = arith.select %21, %28, %29 : vector<1x8x8xi1>, vector<1x8x8xf32>
    %cst_9 = arith.constant dense<0xFF800000> : vector<1x8xf32>
    %31 = vector.multi_reduction <maximumf>, %30, %cst_9 [2] : vector<1x8x8xf32> to vector<1x8xf32>
    %32 = vector.shape_cast %31 : vector<1x8xf32> to vector<1x8x1xf32>
    %33 = vector.broadcast %32 : vector<1x8x1xf32> to vector<1x8x8xf32>
    %34 = arith.subf %30, %33 : vector<1x8x8xf32>
    %35 = math.exp %34 : vector<1x8x8xf32>
    %cst_10 = arith.constant dense<0.000000e+00> : vector<1x8xf32>
    %36 = vector.multi_reduction <add>, %35, %cst_10 [2] : vector<1x8x8xf32> to vector<1x8xf32>
    %37 = vector.shape_cast %36 : vector<1x8xf32> to vector<1x8x1xf32>
    %38 = tpu.reciprocal %37 {approx = true} : vector<1x8x1xf32> -> vector<1x8x1xf32>
    %39 = vector.broadcast %38 : vector<1x8x1xf32> to vector<1x8x8xf32>
    %40 = arith.mulf %35, %39 : vector<1x8x8xf32>
    "tpu.trace_start"() <{level = 10 : i32, message = "bqk,bkd->bqd"}> : () -> ()
    %cst_11 = arith.constant dense<0.000000e+00> : vector<1x8x8xf32>
    %41 = tpu.matmul %40, %27, %cst_11 {dimension_numbers = #tpu.dot_dimension_numbers<[2], [1], [1], [2], [0, 0, 0, 1, 1, 2], [0], [0]>} : vector<1x8x8xf32>, vector<1x8x8xf32>, vector<1x8x8xf32> -> vector<1x8x8xf32>
    "tpu.trace_stop"() : () -> ()
    %42 = vector.shape_cast %41 : vector<1x8x8xf32> to vector<8x8xf32>
    %43 = vector.extract_strided_slice %13 {offsets = [0, 8], sizes = [8, 8], strides = [1, 1]} : vector<8x32xf32> to vector<8x8xf32>
    %44 = vector.shape_cast %43 : vector<8x8xf32> to vector<1x8x8xf32>
    %45 = vector.extract_strided_slice %16 {offsets = [0, 8], sizes = [8, 8], strides = [1, 1]} : vector<8x32xf32> to vector<8x8xf32>
    %46 = vector.shape_cast %45 : vector<8x8xf32> to vector<1x8x8xf32>
    %47 = vector.extract_strided_slice %17 {offsets = [0, 8], sizes = [8, 8], strides = [1, 1]} : vector<8x32xf32> to vector<8x8xf32>
    %48 = vector.shape_cast %47 : vector<8x8xf32> to vector<1x8x8xf32>
    "tpu.trace_start"() <{level = 10 : i32, message = "bqd,bkd->bqk"}> : () -> ()
    %cst_12 = arith.constant dense<0.000000e+00> : vector<1x8x8xf32>
    %49 = tpu.matmul %44, %46, %cst_12 {dimension_numbers = #tpu.dot_dimension_numbers<[2], [2], [1], [1], [0, 0, 0, 1, 1, 1], [0], [0]>} : vector<1x8x8xf32>, vector<1x8x8xf32>, vector<1x8x8xf32> -> vector<1x8x8xf32>
    %cst_13 = arith.constant 0xFF800000 : f32
    "tpu.trace_stop"() : () -> ()
    %50 = vector.broadcast %cst_13 : f32 to vector<1x8x8xf32>
    %51 = arith.select %21, %49, %50 : vector<1x8x8xi1>, vector<1x8x8xf32>
    %cst_14 = arith.constant dense<0xFF800000> : vector<1x8xf32>
    %52 = vector.multi_reduction <maximumf>, %51, %cst_14 [2] : vector<1x8x8xf32> to vector<1x8xf32>
    %53 = vector.shape_cast %52 : vector<1x8xf32> to vector<1x8x1xf32>
    %54 = vector.broadcast %53 : vector<1x8x1xf32> to vector<1x8x8xf32>
    %55 = arith.subf %51, %54 : vector<1x8x8xf32>
    %56 = math.exp %55 : vector<1x8x8xf32>
    %cst_15 = arith.constant dense<0.000000e+00> : vector<1x8xf32>
    %57 = vector.multi_reduction <add>, %56, %cst_15 [2] : vector<1x8x8xf32> to vector<1x8xf32>
    %58 = vector.shape_cast %57 : vector<1x8xf32> to vector<1x8x1xf32>
    %59 = tpu.reciprocal %58 {approx = true} : vector<1x8x1xf32> -> vector<1x8x1xf32>
    %60 = vector.broadcast %59 : vector<1x8x1xf32> to vector<1x8x8xf32>
    %61 = arith.mulf %56, %60 : vector<1x8x8xf32>
    "tpu.trace_start"() <{level = 10 : i32, message = "bqk,bkd->bqd"}> : () -> ()
    %cst_16 = arith.constant dense<0.000000e+00> : vector<1x8x8xf32>
    %62 = tpu.matmul %61, %48, %cst_16 {dimension_numbers = #tpu.dot_dimension_numbers<[2], [1], [1], [2], [0, 0, 0, 1, 1, 2], [0], [0]>} : vector<1x8x8xf32>, vector<1x8x8xf32>, vector<1x8x8xf32> -> vector<1x8x8xf32>
    "tpu.trace_stop"() : () -> ()
    %63 = vector.shape_cast %62 : vector<1x8x8xf32> to vector<8x8xf32>
    %64 = vector.extract_strided_slice %13 {offsets = [0, 16], sizes = [8, 8], strides = [1, 1]} : vector<8x32xf32> to vector<8x8xf32>
    %65 = vector.shape_cast %64 : vector<8x8xf32> to vector<1x8x8xf32>
    %66 = vector.extract_strided_slice %16 {offsets = [0, 16], sizes = [8, 8], strides = [1, 1]} : vector<8x32xf32> to vector<8x8xf32>
    %67 = vector.shape_cast %66 : vector<8x8xf32> to vector<1x8x8xf32>
    %68 = vector.extract_strided_slice %17 {offsets = [0, 16], sizes = [8, 8], strides = [1, 1]} : vector<8x32xf32> to vector<8x8xf32>
    %69 = vector.shape_cast %68 : vector<8x8xf32> to vector<1x8x8xf32>
    "tpu.trace_start"() <{level = 10 : i32, message = "bqd,bkd->bqk"}> : () -> ()
    %cst_17 = arith.constant dense<0.000000e+00> : vector<1x8x8xf32>
    %70 = tpu.matmul %65, %67, %cst_17 {dimension_numbers = #tpu.dot_dimension_numbers<[2], [2], [1], [1], [0, 0, 0, 1, 1, 1], [0], [0]>} : vector<1x8x8xf32>, vector<1x8x8xf32>, vector<1x8x8xf32> -> vector<1x8x8xf32>
    %cst_18 = arith.constant 0xFF800000 : f32
    "tpu.trace_stop"() : () -> ()
    %71 = vector.broadcast %cst_18 : f32 to vector<1x8x8xf32>
    %72 = arith.select %21, %70, %71 : vector<1x8x8xi1>, vector<1x8x8xf32>
    %cst_19 = arith.constant dense<0xFF800000> : vector<1x8xf32>
    %73 = vector.multi_reduction <maximumf>, %72, %cst_19 [2] : vector<1x8x8xf32> to vector<1x8xf32>
    %74 = vector.shape_cast %73 : vector<1x8xf32> to vector<1x8x1xf32>
    %75 = vector.broadcast %74 : vector<1x8x1xf32> to vector<1x8x8xf32>
    %76 = arith.subf %72, %75 : vector<1x8x8xf32>
    %77 = math.exp %76 : vector<1x8x8xf32>
    %cst_20 = arith.constant dense<0.000000e+00> : vector<1x8xf32>
    %78 = vector.multi_reduction <add>, %77, %cst_20 [2] : vector<1x8x8xf32> to vector<1x8xf32>
    %79 = vector.shape_cast %78 : vector<1x8xf32> to vector<1x8x1xf32>
    %80 = tpu.reciprocal %79 {approx = true} : vector<1x8x1xf32> -> vector<1x8x1xf32>
    %81 = vector.broadcast %80 : vector<1x8x1xf32> to vector<1x8x8xf32>
    %82 = arith.mulf %77, %81 : vector<1x8x8xf32>
    "tpu.trace_start"() <{level = 10 : i32, message = "bqk,bkd->bqd"}> : () -> ()
    %cst_21 = arith.constant dense<0.000000e+00> : vector<1x8x8xf32>
    %83 = tpu.matmul %82, %69, %cst_21 {dimension_numbers = #tpu.dot_dimension_numbers<[2], [1], [1], [2], [0, 0, 0, 1, 1, 2], [0], [0]>} : vector<1x8x8xf32>, vector<1x8x8xf32>, vector<1x8x8xf32> -> vector<1x8x8xf32>
    "tpu.trace_stop"() : () -> ()
    %84 = vector.shape_cast %83 : vector<1x8x8xf32> to vector<8x8xf32>
    %85 = vector.extract_strided_slice %13 {offsets = [0, 24], sizes = [8, 8], strides = [1, 1]} : vector<8x32xf32> to vector<8x8xf32>
    %86 = vector.shape_cast %85 : vector<8x8xf32> to vector<1x8x8xf32>
    %87 = vector.extract_strided_slice %16 {offsets = [0, 24], sizes = [8, 8], strides = [1, 1]} : vector<8x32xf32> to vector<8x8xf32>
    %88 = vector.shape_cast %87 : vector<8x8xf32> to vector<1x8x8xf32>
    %89 = vector.extract_strided_slice %17 {offsets = [0, 24], sizes = [8, 8], strides = [1, 1]} : vector<8x32xf32> to vector<8x8xf32>
    %90 = vector.shape_cast %89 : vector<8x8xf32> to vector<1x8x8xf32>
    "tpu.trace_start"() <{level = 10 : i32, message = "bqd,bkd->bqk"}> : () -> ()
    %cst_22 = arith.constant dense<0.000000e+00> : vector<1x8x8xf32>
    %91 = tpu.matmul %86, %88, %cst_22 {dimension_numbers = #tpu.dot_dimension_numbers<[2], [2], [1], [1], [0, 0, 0, 1, 1, 1], [0], [0]>} : vector<1x8x8xf32>, vector<1x8x8xf32>, vector<1x8x8xf32> -> vector<1x8x8xf32>
    %cst_23 = arith.constant 0xFF800000 : f32
    "tpu.trace_stop"() : () -> ()
    %92 = vector.broadcast %cst_23 : f32 to vector<1x8x8xf32>
    %93 = arith.select %21, %91, %92 : vector<1x8x8xi1>, vector<1x8x8xf32>
    %cst_24 = arith.constant dense<0xFF800000> : vector<1x8xf32>
    %94 = vector.multi_reduction <maximumf>, %93, %cst_24 [2] : vector<1x8x8xf32> to vector<1x8xf32>
    %95 = vector.shape_cast %94 : vector<1x8xf32> to vector<1x8x1xf32>
    %96 = vector.broadcast %95 : vector<1x8x1xf32> to vector<1x8x8xf32>
    %97 = arith.subf %93, %96 : vector<1x8x8xf32>
    %98 = math.exp %97 : vector<1x8x8xf32>
    %cst_25 = arith.constant dense<0.000000e+00> : vector<1x8xf32>
    %99 = vector.multi_reduction <add>, %98, %cst_25 [2] : vector<1x8x8xf32> to vector<1x8xf32>
    %100 = vector.shape_cast %99 : vector<1x8xf32> to vector<1x8x1xf32>
    %101 = tpu.reciprocal %100 {approx = true} : vector<1x8x1xf32> -> vector<1x8x1xf32>
    %102 = vector.broadcast %101 : vector<1x8x1xf32> to vector<1x8x8xf32>
    %103 = arith.mulf %98, %102 : vector<1x8x8xf32>
    "tpu.trace_start"() <{level = 10 : i32, message = "bqk,bkd->bqd"}> : () -> ()
    %cst_26 = arith.constant dense<0.000000e+00> : vector<1x8x8xf32>
    %104 = tpu.matmul %103, %90, %cst_26 {dimension_numbers = #tpu.dot_dimension_numbers<[2], [1], [1], [2], [0, 0, 0, 1, 1, 2], [0], [0]>} : vector<1x8x8xf32>, vector<1x8x8xf32>, vector<1x8x8xf32> -> vector<1x8x8xf32>
    "tpu.trace_stop"() : () -> ()
    %105 = vector.shape_cast %104 : vector<1x8x8xf32> to vector<8x8xf32>
    %106 = tpu.concatenate %42, %63, %84, %105 in 1 : vector<8x8xf32>, vector<8x8xf32>, vector<8x8xf32>, vector<8x8xf32> -> vector<8x32xf32>
    %c0_27 = arith.constant 0 : index
    %c0_28 = arith.constant 0 : index
    %107 = vector.load %arg3[%c0_27, %c0_28] : memref<32x32xf32, #tpu.memory_space<vmem>>, vector<32x32xf32>
    %cst_29 = arith.constant dense<0.000000e+00> : vector<8x32xf32>
    %108 = tpu.matmul %106, %107, %cst_29 {dimension_numbers = #tpu.dot_dimension_numbers<[1], [0], [0], [1], [0, 0, 1, 1], [], []>} : vector<8x32xf32>, vector<32x32xf32>, vector<8x32xf32> -> vector<8x32xf32>
    %c0_30 = arith.constant 0 : index
    %c0_31 = arith.constant 0 : index
    %109 = vector.load %arg4[%c0_30, %c0_31] : memref<1x32xf32, #tpu.memory_space<vmem>>, vector<1x32xf32>
    %110 = vector.broadcast %109 : vector<1x32xf32> to vector<8x32xf32>
    %111 = arith.addf %108, %110 : vector<8x32xf32>
    %112 = arith.addf %0, %111 : vector<8x32xf32>
    %113 = arith.mulf %112, %112 : vector<8x32xf32>
    %cst_32 = arith.constant dense<0.000000e+00> : vector<8xf32>
    %114 = vector.multi_reduction <add>, %113, %cst_32 [1] : vector<8x32xf32> to vector<8xf32>
    %115 = vector.shape_cast %114 : vector<8xf32> to vector<8x1xf32>
    %cst_33 = arith.constant 3.200000e+01 : f32
    %116 = vector.broadcast %cst_33 : f32 to vector<8x1xf32>
    %117 = arith.divf %115, %116 : vector<8x1xf32>
    %118 = math.rsqrt %117 : vector<8x1xf32>
    %119 = vector.broadcast %118 : vector<8x1xf32> to vector<8x32xf32>
    %120 = arith.mulf %112, %119 : vector<8x32xf32>
    %c0_34 = arith.constant 0 : index
    %c0_35 = arith.constant 0 : index
    %121 = vector.load %arg5[%c0_34, %c0_35] : memref<32x128xf32, #tpu.memory_space<vmem>>, vector<32x128xf32>
    %cst_36 = arith.constant dense<0.000000e+00> : vector<8x128xf32>
    %122 = tpu.matmul %120, %121, %cst_36 {dimension_numbers = #tpu.dot_dimension_numbers<[1], [0], [0], [1], [0, 0, 1, 1], [], []>} : vector<8x32xf32>, vector<32x128xf32>, vector<8x128xf32> -> vector<8x128xf32>
    %c0_37 = arith.constant 0 : index
    %c0_38 = arith.constant 0 : index
    %123 = vector.load %arg6[%c0_37, %c0_38] : memref<1x128xf32, #tpu.memory_space<vmem>>, vector<1x128xf32>
    %124 = vector.broadcast %123 : vector<1x128xf32> to vector<8x128xf32>
    %125 = arith.addf %122, %124 : vector<8x128xf32>
    %cst_39 = arith.constant 0.000000e+00 : f32
    %126 = vector.broadcast %cst_39 : f32 to vector<8x128xf32>
    %127 = arith.maximumf %125, %126 : vector<8x128xf32>
    %c0_40 = arith.constant 0 : index
    %c0_41 = arith.constant 0 : index
    %128 = vector.load %arg7[%c0_40, %c0_41] : memref<128x32xf32, #tpu.memory_space<vmem>>, vector<128x32xf32>
    %cst_42 = arith.constant dense<0.000000e+00> : vector<8x32xf32>
    %129 = tpu.matmul %127, %128, %cst_42 {dimension_numbers = #tpu.dot_dimension_numbers<[1], [0], [0], [1], [0, 0, 1, 1], [], []>} : vector<8x128xf32>, vector<128x32xf32>, vector<8x32xf32> -> vector<8x32xf32>
    %c0_43 = arith.constant 0 : index
    %c0_44 = arith.constant 0 : index
    %130 = vector.load %arg8[%c0_43, %c0_44] : memref<1x32xf32, #tpu.memory_space<vmem>>, vector<1x32xf32>
    %131 = vector.broadcast %130 : vector<1x32xf32> to vector<8x32xf32>
    %132 = arith.addf %129, %131 : vector<8x32xf32>
    %133 = arith.addf %112, %132 : vector<8x32xf32>
    %c0_45 = arith.constant 0 : index
    %c0_46 = arith.constant 0 : index
    %134 = vector.load %arg9[%c0_45, %c0_46] : memref<8x32xf32, #tpu.memory_space<vmem>>, vector<8x32xf32>
    tpu.vector_store %arg9[%c0_45, %c0_46], %133 {strides = array<i32>} : memref<8x32xf32, #tpu.memory_space<vmem>>, vector<8x32xf32>,
    return
  }
  func.func @transform_0(%arg0: i32) -> (i32, i32) {
    %c0_i32 = arith.constant 0 : i32
    %c0_i32_0 = arith.constant 0 : i32
    return %arg0, %c0_i32 : i32, i32
  }
  func.func @transform_1(%arg0: i32) -> (i32, i32) {
    %c0_i32 = arith.constant 0 : i32
    %c0_i32_0 = arith.constant 0 : i32
    %c0_i32_1 = arith.constant 0 : i32
    return %c0_i32, %c0_i32_0 : i32, i32
  }
  func.func @transform_2(%arg0: i32) -> (i32, i32) {
    %c0_i32 = arith.constant 0 : i32
    %c0_i32_0 = arith.constant 0 : i32
    %c0_i32_1 = arith.constant 0 : i32
    return %c0_i32, %c0_i32_0 : i32, i32
  }
  func.func @transform_3(%arg0: i32) -> (i32, i32) {
    %c0_i32 = arith.constant 0 : i32
    %c0_i32_0 = arith.constant 0 : i32
    %c0_i32_1 = arith.constant 0 : i32
    return %c0_i32, %c0_i32_0 : i32, i32
  }
  func.func @transform_4(%arg0: i32) -> (i32, i32) {
    %c0_i32 = arith.constant 0 : i32
    %c0_i32_0 = arith.constant 0 : i32
    %c0_i32_1 = arith.constant 0 : i32
    return %c0_i32, %c0_i32_0 : i32, i32
  }
  func.func @transform_5(%arg0: i32) -> (i32, i32) {
    %c0_i32 = arith.constant 0 : i32
    %c0_i32_0 = arith.constant 0 : i32
    %c0_i32_1 = arith.constant 0 : i32
    return %c0_i32, %c0_i32_0 : i32, i32
  }
  func.func @transform_6(%arg0: i32) -> (i32, i32) {
    %c0_i32 = arith.constant 0 : i32
    %c0_i32_0 = arith.constant 0 : i32
    %c0_i32_1 = arith.constant 0 : i32
    return %c0_i32, %c0_i32_0 : i32, i32
  }
  func.func @transform_7(%arg0: i32) -> (i32, i32) {
    %c0_i32 = arith.constant 0 : i32
    %c0_i32_0 = arith.constant 0 : i32
    %c0_i32_1 = arith.constant 0 : i32
    return %c0_i32, %c0_i32_0 : i32, i32
  }
  func.func @transform_8(%arg0: i32) -> (i32, i32) {
    %c0_i32 = arith.constant 0 : i32
    %c0_i32_0 = arith.constant 0 : i32
    return %arg0, %c0_i32 : i32, i32
  }
}

</mosaic_0001>

<llo_original>
// kernel: tpu_custom_call.1
$region0: #{tpu_custom_call.1}
  #allocation0 [shape = 'u32[]', space=smem, size = 0x4, offset = 0x4, fixed_abs, tag = 'smem constant byte address 0x4 - core index']
  #allocation1 [shape = 'u32[144,128]{1,0:T(1,128)}', space=vmem, size = 0x12000, scoped, tag = 'internal scratch']
  %s0 = inlined_call_operand.hbm [shape: f32[16,32], index: 0, kind: input, shape index: {}]
  %s1 = inlined_call_operand.hbm [shape: f32[32,96], index: 1, kind: input, shape index: {}]
  %s2 = inlined_call_operand.hbm [shape: f32[32,32], index: 2, kind: input, shape index: {}]
  %s3 = inlined_call_operand.hbm [shape: f32[1,32], index: 3, kind: input, shape index: {}]
  %s4 = inlined_call_operand.hbm [shape: f32[32,128], index: 4, kind: input, shape index: {}]
  %s5 = inlined_call_operand.hbm [shape: f32[1,128], index: 5, kind: input, shape index: {}]
  %s6 = inlined_call_operand.hbm [shape: f32[128,32], index: 6, kind: input, shape index: {}]
  %s7 = inlined_call_operand.hbm [shape: f32[1,32], index: 7, kind: input, shape index: {}]
  %s8 = inlined_call_operand.hbm [shape: f32[16,32], index: 8, kind: output, shape index: {}]
  %s9 = sld [smem:[#allocation0]]
  $region97: #{tpu_custom_call.1} parent=0
    _
  %s11 = ssub.s32 1, %s9
  %s12 = scalar_select 0, %s11, %s9
  $region1: #{tpu_custom_call.1} parent=0
    #allocation2 [shape = 'u8[8192]{0}', space=vmem, size = 0x2000, scoped, tag = 'input window, operand 0']
    #allocation3 [shape = 's32[2]{0}', space=sflag, size = 0x8, scoped, tag = 'scoped memory for tpu_custom_call.1']
    #allocation4 [shape = 's32[2]{0}', space=sflag, size = 0x8, scoped, tag = 'scoped memory for tpu_custom_call.1']
    #allocation5 [shape = 'u8[16384]{0}', space=vmem, size = 0x4000, scoped, tag = 'input window, operand 1, single buffered']
    #allocation6 [shape = 's32[1]{0}', space=sflag, size = 0x4, scoped, tag = 'scoped memory for tpu_custom_call.1']
    #allocation7 [shape = 'u8[16384]{0}', space=vmem, size = 0x4000, scoped, tag = 'input window, operand 2, single buffered']
    #allocation8 [shape = 'u8[512]{0}', space=vmem, size = 0x400, scoped, tag = 'input window, operand 3, single buffered']
    #allocation9 [shape = 's32[1]{0}', space=sflag, size = 0x4, scoped, tag = 'scoped memory for tpu_custom_call.1']
    #allocation10 [shape = 'u8[16384]{0}', space=vmem, size = 0x4000, scoped, tag = 'input window, operand 4, single buffered']
    #allocation11 [shape = 'u8[512]{0}', space=vmem, size = 0x400, scoped, tag = 'input window, operand 5, single buffered']
    #allocation12 [shape = 's32[1]{0}', space=sflag, size = 0x4, scoped, tag = 'scoped memory for tpu_custom_call.1']
    #allocation13 [shape = 'u8[65536]{0}', space=vmem, size = 0x10000, scoped, tag = 'input window, operand 6, single buffered']
    #allocation14 [shape = 'u8[512]{0}', space=vmem, size = 0x400, scoped, tag = 'input window, operand 7, single buffered']
    #allocation15 [shape = 's32[1]{0}', space=sflag, size = 0x4, scoped, tag = 'scoped memory for tpu_custom_call.1']
    #allocation16 [shape = 'u8[8192]{0}', space=vmem, size = 0x2000, scoped, tag = 'output window, operand 0']
    %13 = vsyncpa [#allocation3], 0
    %s14 = scalar_lea.sflag [#allocation3], 1
    %15 = vsyncpa %s14, 0
    %16 = vsyncpa [#allocation6], 0
    %17 = vsyncpa [#allocation9], 0
    %18 = vsyncpa [#allocation12], 0
    %19 = vsyncpa [#allocation15], 0
    %20 = vsyncpa [#allocation4], 0
    %s21 = scalar_lea.sflag [#allocation4], 1
    %22 = vsyncpa %s21, 0
    loop: start=0, step=1, limit=4
    $region2: #{tpu_custom_call.1} parent=1 // loop_pre_header
      _
    $region3: #{tpu_custom_call.1} parent=1 // loop_header
      %s24 = sphi 0, %s28
      %p25 = scmp.ge.s32.totalorder %s24, 4
      %s34 = sphi 0, %s36
      %s37 = sphi 0, %s34
      %s38 = sphi 0, %s37
      %s54 = sphi 0, %s38
      %s58 = sphi 0, %s58
      %s60 = sphi 0, %s58
      %s61 = sphi 0, %s60
      %s75 = sphi 0, %s61
      %s79 = sphi 0, %s79
      %s81 = sphi 0, %s79
      %s82 = sphi 0, %s81
      %s96 = sphi 0, %s82
      %s100 = sphi 0, %s100
      %s102 = sphi 0, %s100
      %s103 = sphi 0, %s102
      %s117 = sphi 0, %s103
      %s121 = sphi 0, %s121
      %s123 = sphi 0, %s121
      %s124 = sphi 0, %s123
      %s138 = sphi 0, %s124
      %s142 = sphi 0, %s142
      %s144 = sphi 0, %s142
      %s145 = sphi 0, %s144
      %s159 = sphi 0, %s145
      %s163 = sphi 0, %s163
      %s165 = sphi 0, %s163
      %s166 = sphi 0, %s165
      %s180 = sphi 0, %s166
      %s184 = sphi 0, %s184
      %s186 = sphi 0, %s184
      %s187 = sphi 0, %s186
      %s201 = sphi 0, %s187
      %s207 = sphi 0, %s209
      %s210 = sphi 0, %s207
      %s211 = sphi 0, %s210
      %s227 = sphi 0, %s211
    $region4: #{tpu_custom_call.1} parent=1 // loop_header_branch
      %27 = sbr.rel (%p25) target = $region8
    $region5: #{tpu_custom_call.1} parent=1 // loop_body
      %s29 = ssub.s32 %s24, 1
      %s30 = ssub.s32 %s24, 2
      %s31 = sadd.s32 %s24, 1
      %s32 = ssub.s32 %s24, %s31
      %p33 = scmp.eq.s32.totalorder %s32, 0
      %s35 = sadd.s32 %s34, 1
      %s36 = scalar_select %p33, %s34, %s35
      %p39 = pneg %p33
      %p40 = scmp.eq.s32.totalorder %s24, 1
      %p41 = por %p39, %p40
      %p42 = scmp.ne.s32.totalorder %s34, %s37
      %p43 = scmp.eq.s32.totalorder %s24, 0
      %p44 = por %p42, %p43
      %p45 = scmp.ne.s32.totalorder %s34, %s37
      %p46 = scmp.eq.s32.totalorder %s29, 1
      %p47 = por %p45, %p46
      %p48 = scmp.ne.s32.totalorder %s37, %s38
      %p49 = scmp.eq.s32.totalorder %s29, 0
      %p50 = por %p48, %p49
      %p51 = scmp.ne.s32.totalorder %s37, %s38
      %p52 = scmp.eq.s32.totalorder %s30, 1
      %p53 = por %p51, %p52
      %p55 = scmp.ne.s32.totalorder %s38, %s54
      %p56 = scmp.eq.s32.totalorder %s30, 0
      %p57 = por %p55, %p56
      %s59 = sadd.s32 %s58, 1
      %p62 = scmp.eq.s32.totalorder %s24, 1
      %p63 = scmp.ne.s32.totalorder %s58, %s60
      %p64 = scmp.eq.s32.totalorder %s24, 0
      %p65 = por %p63, %p64
      %p66 = scmp.ne.s32.totalorder %s58, %s60
      %p67 = scmp.eq.s32.totalorder %s29, 1
      %p68 = por %p66, %p67
      %p69 = scmp.ne.s32.totalorder %s60, %s61
      %p70 = scmp.eq.s32.totalorder %s29, 0
      %p71 = por %p69, %p70
      %p72 = scmp.ne.s32.totalorder %s60, %s61
      %p73 = scmp.eq.s32.totalorder %s30, 1
      %p74 = por %p72, %p73
      %p76 = scmp.ne.s32.totalorder %s61, %s75
      %p77 = scmp.eq.s32.totalorder %s30, 0
      %p78 = por %p76, %p77
      %s80 = sadd.s32 %s79, 1
      %p83 = scmp.eq.s32.totalorder %s24, 1
      %p84 = scmp.ne.s32.totalorder %s79, %s81
      %p85 = scmp.eq.s32.totalorder %s24, 0
      %p86 = por %p84, %p85
      %p87 = scmp.ne.s32.totalorder %s79, %s81
      %p88 = scmp.eq.s32.totalorder %s29, 1
      %p89 = por %p87, %p88
      %p90 = scmp.ne.s32.totalorder %s81, %s82
      %p91 = scmp.eq.s32.totalorder %s29, 0
      %p92 = por %p90, %p91
      %p93 = scmp.ne.s32.totalorder %s81, %s82
      %p94 = scmp.eq.s32.totalorder %s30, 1
      %p95 = por %p93, %p94
      %p97 = scmp.ne.s32.totalorder %s82, %s96
      %p98 = scmp.eq.s32.totalorder %s30, 0
      %p99 = por %p97, %p98
      %s101 = sadd.s32 %s100, 1
      %p104 = scmp.eq.s32.totalorder %s24, 1
      %p105 = scmp.ne.s32.totalorder %s100, %s102
      %p106 = scmp.eq.s32.totalorder %s24, 0
      %p107 = por %p105, %p106
      %p108 = scmp.ne.s32.totalorder %s100, %s102
      %p109 = scmp.eq.s32.totalorder %s29, 1
      %p110 = por %p108, %p109
      %p111 = scmp.ne.s32.totalorder %s102, %s103
      %p112 = scmp.eq.s32.totalorder %s29, 0
      %p113 = por %p111, %p112
      %p114 = scmp.ne.s32.totalorder %s102, %s103
      %p115 = scmp.eq.s32.totalorder %s30, 1
      %p116 = por %p114, %p115
      %p118 = scmp.ne.s32.totalorder %s103, %s117
      %p119 = scmp.eq.s32.totalorder %s30, 0
      %p120 = por %p118, %p119
      %s122 = sadd.s32 %s121, 1
      %p125 = scmp.eq.s32.totalorder %s24, 1
      %p126 = scmp.ne.s32.totalorder %s121, %s123
      %p127 = scmp.eq.s32.totalorder %s24, 0
      %p128 = por %p126, %p127
      %p129 = scmp.ne.s32.totalorder %s121, %s123
      %p130 = scmp.eq.s32.totalorder %s29, 1
      %p131 = por %p129, %p130
      %p132 = scmp.ne.s32.totalorder %s123, %s124
      %p133 = scmp.eq.s32.totalorder %s29, 0
      %p134 = por %p132, %p133
      %p135 = scmp.ne.s32.totalorder %s123, %s124
      %p136 = scmp.eq.s32.totalorder %s30, 1
      %p137 = por %p135, %p136
      %p139 = scmp.ne.s32.totalorder %s124, %s138
      %p140 = scmp.eq.s32.totalorder %s30, 0
      %p141 = por %p139, %p140
      %s143 = sadd.s32 %s142, 1
      %p146 = scmp.eq.s32.totalorder %s24, 1
      %p147 = scmp.ne.s32.totalorder %s142, %s144
      %p148 = scmp.eq.s32.totalorder %s24, 0
      %p149 = por %p147, %p148
      %p150 = scmp.ne.s32.totalorder %s142, %s144
      %p151 = scmp.eq.s32.totalorder %s29, 1
      %p152 = por %p150, %p151
      %p153 = scmp.ne.s32.totalorder %s144, %s145
      %p154 = scmp.eq.s32.totalorder %s29, 0
      %p155 = por %p153, %p154
      %p156 = scmp.ne.s32.totalorder %s144, %s145
      %p157 = scmp.eq.s32.totalorder %s30, 1
      %p158 = por %p156, %p157
      %p160 = scmp.ne.s32.totalorder %s145, %s159
      %p161 = scmp.eq.s32.totalorder %s30, 0
      %p162 = por %p160, %p161
      %s164 = sadd.s32 %s163, 1
      %p167 = scmp.eq.s32.totalorder %s24, 1
      %p168 = scmp.ne.s32.totalorder %s163, %s165
      %p169 = scmp.eq.s32.totalorder %s24, 0
      %p170 = por %p168, %p169
      %p171 = scmp.ne.s32.totalorder %s163, %s165
      %p172 = scmp.eq.s32.totalorder %s29, 1
      %p173 = por %p171, %p172
      %p174 = scmp.ne.s32.totalorder %s165, %s166
      %p175 = scmp.eq.s32.totalorder %s29, 0
      %p176 = por %p174, %p175
      %p177 = scmp.ne.s32.totalorder %s165, %s166
      %p178 = scmp.eq.s32.totalorder %s30, 1
      %p179 = por %p177, %p178
      %p181 = scmp.ne.s32.totalorder %s166, %s180
      %p182 = scmp.eq.s32.totalorder %s30, 0
      %p183 = por %p181, %p182
      %s185 = sadd.s32 %s184, 1
      %p188 = scmp.eq.s32.totalorder %s24, 1
      %p189 = scmp.ne.s32.totalorder %s184, %s186
      %p190 = scmp.eq.s32.totalorder %s24, 0
      %p191 = por %p189, %p190
      %p192 = scmp.ne.s32.totalorder %s184, %s186
      %p193 = scmp.eq.s32.totalorder %s29, 1
      %p194 = por %p192, %p193
      %p195 = scmp.ne.s32.totalorder %s186, %s187
      %p196 = scmp.eq.s32.totalorder %s29, 0
      %p197 = por %p195, %p196
      %p198 = scmp.ne.s32.totalorder %s186, %s187
      %p199 = scmp.eq.s32.totalorder %s30, 1
      %p200 = por %p198, %p199
      %p202 = scmp.ne.s32.totalorder %s187, %s201
      %p203 = scmp.eq.s32.totalorder %s30, 0
      %p204 = por %p202, %p203
      %s205 = ssub.s32 %s24, %s31
      %p206 = scmp.eq.s32.totalorder %s205, 0
      %s208 = sadd.s32 %s207, 1
      %s209 = scalar_select %p206, %s207, %s208
      %p212 = pneg %p206
      %p213 = scmp.eq.s32.totalorder %s24, 1
      %p214 = por %p212, %p213
      %p215 = scmp.ne.s32.totalorder %s207, %s210
      %p216 = scmp.eq.s32.totalorder %s24, 0
      %p217 = por %p215, %p216
      %p218 = scmp.ne.s32.totalorder %s207, %s210
      %p219 = scmp.eq.s32.totalorder %s29, 1
      %p220 = por %p218, %p219
      %p221 = scmp.ne.s32.totalorder %s210, %s211
      %p222 = scmp.eq.s32.totalorder %s29, 0
      %p223 = por %p221, %p222
      %p224 = scmp.ne.s32.totalorder %s210, %s211
      %p225 = scmp.eq.s32.totalorder %s30, 1
      %p226 = por %p224, %p225
      %p228 = scmp.ne.s32.totalorder %s211, %s227
      %p229 = scmp.eq.s32.totalorder %s30, 0
      %p230 = por %p228, %p229
      %p231 = scmp.le.s32.totalorder 1, %s24
      %p232 = scmp.lt.s32.totalorder %s24, 3
      %p233 = pnand %p231, %p232
      %p234 = pneg %p233
      // Predicated region
      $region9: #{tpu_custom_call.1} parent=5 // pred_check
        _
      $region10: #{tpu_custom_call.1} parent=5 // pred_check_branch
        %236 = sbr.rel (%p233) target = $region12
      $region11: #{tpu_custom_call.1} parent=5 // pred_region
        %s237 = ssub.s32 %s24, 1
        // Predicated region
        $region13: #{tpu_custom_call.1} parent=11 // pred_check
          %p238 = pneg %p71
        $region14: #{tpu_custom_call.1} parent=11 // pred_check_branch
          %240 = sbr.rel (%p238) target = $region16
        $region15: #{tpu_custom_call.1} parent=11 // pred_region
          %s242 = ssub.s32 512, 512
          %243 = vsyncadd [#allocation6], %s242
          %s244 = sshll.u32 [#allocation5], 4
          %s245 = int_to_ptr.vmem [resolvable:$true] %s244
          %250 = dma.hbm_to_vmem [thread:$0]  %s1, 512, %s245, [#allocation6], 128, 128, 8
        $region16: #{tpu_custom_call.1} parent=11 // pred_fallthru
          _
        // Predicated region
        $region17: #{tpu_custom_call.1} parent=11 // pred_check
          %p251 = pneg %p92
        $region18: #{tpu_custom_call.1} parent=11 // pred_check_branch
          %253 = sbr.rel (%p251) target = $region20
        $region19: #{tpu_custom_call.1} parent=11 // pred_region
          %s255 = ssub.s32 512, 512
          %256 = vsyncadd [#allocation6], %s255
          %s257 = sshll.u32 [#allocation7], 4
          %s258 = int_to_ptr.vmem [resolvable:$true] %s257
          %263 = dma.hbm_to_vmem [thread:$0]  %s2, 512, %s258, [#allocation6], 128, 128, 8
        $region20: #{tpu_custom_call.1} parent=11 // pred_fallthru
          _
        // Predicated region
        $region21: #{tpu_custom_call.1} parent=11 // pred_check
          %p264 = pneg %p113
        $region22: #{tpu_custom_call.1} parent=11 // pred_check_branch
          %266 = sbr.rel (%p264) target = $region24
        $region23: #{tpu_custom_call.1} parent=11 // pred_region
          %s268 = ssub.s32 16, 16
          %269 = vsyncadd [#allocation9], %s268
          %s271 = sshll.u32 [#allocation8], 4
          %s272 = int_to_ptr.vmem [resolvable:$true] %s271
          %274 = dma.hbm_to_vmem [thread:$0]  %s3, 16, %s272, [#allocation9]
        $region24: #{tpu_custom_call.1} parent=11 // pred_fallthru
          _
        // Predicated region
        $region25: #{tpu_custom_call.1} parent=11 // pred_check
          %p275 = pneg %p134
        $region26: #{tpu_custom_call.1} parent=11 // pred_check_branch
          %277 = sbr.rel (%p275) target = $region28
        $region27: #{tpu_custom_call.1} parent=11 // pred_region
          %s279 = ssub.s32 512, 512
          %280 = vsyncadd [#allocation9], %s279
          %s281 = sshll.u32 [#allocation10], 4
          %s282 = int_to_ptr.vmem [resolvable:$true] %s281
          %287 = dma.hbm_to_vmem [thread:$0]  %s4, 512, %s282, [#allocation9], 128, 128, 8
        $region28: #{tpu_custom_call.1} parent=11 // pred_fallthru
          _
        // Predicated region
        $region29: #{tpu_custom_call.1} parent=11 // pred_check
          %p288 = pneg %p155
        $region30: #{tpu_custom_call.1} parent=11 // pred_check_branch
          %290 = sbr.rel (%p288) target = $region32
        $region31: #{tpu_custom_call.1} parent=11 // pred_region
          %s292 = ssub.s32 16, 16
          %293 = vsyncadd [#allocation12], %s292
          %s295 = sshll.u32 [#allocation11], 4
          %s296 = int_to_ptr.vmem [resolvable:$true] %s295
          %298 = dma.hbm_to_vmem [thread:$0]  %s5, 16, %s296, [#allocation12]
        $region32: #{tpu_custom_call.1} parent=11 // pred_fallthru
          _
        // Predicated region
        $region33: #{tpu_custom_call.1} parent=11 // pred_check
          %p299 = pneg %p176
        $region34: #{tpu_custom_call.1} parent=11 // pred_check_branch
          %301 = sbr.rel (%p299) target = $region36
        $region35: #{tpu_custom_call.1} parent=11 // pred_region
          %s303 = ssub.s32 2048, 2048
          %304 = vsyncadd [#allocation12], %s303
          %s305 = sshll.u32 [#allocation13], 4
          %s306 = int_to_ptr.vmem [resolvable:$true] %s305
          %311 = dma.hbm_to_vmem [thread:$0]  %s6, 2048, %s306, [#allocation12], 128, 128, 8
        $region36: #{tpu_custom_call.1} parent=11 // pred_fallthru
          _
        // Predicated region
        $region37: #{tpu_custom_call.1} parent=11 // pred_check
          %p312 = pneg %p197
        $region38: #{tpu_custom_call.1} parent=11 // pred_check_branch
          %314 = sbr.rel (%p312) target = $region40
        $region39: #{tpu_custom_call.1} parent=11 // pred_region
          %s316 = ssub.s32 16, 16
          %317 = vsyncadd [#allocation15], %s316
          %s319 = sshll.u32 [#allocation14], 4
          %s320 = int_to_ptr.vmem [resolvable:$true] %s319
          %322 = dma.hbm_to_vmem [thread:$0]  %s7, 16, %s320, [#allocation15]
        $region40: #{tpu_custom_call.1} parent=11 // pred_fallthru
          _
      $region12: #{tpu_custom_call.1} parent=5 // pred_fallthru
        _
      %p323 = scmp.lt.s32.totalorder %s24, 2
      // Predicated region
      $region41: #{tpu_custom_call.1} parent=5 // pred_check
        %p324 = pneg %p323
      $region42: #{tpu_custom_call.1} parent=5 // pred_check_branch
        %326 = sbr.rel (%p324) target = $region44
      $region43: #{tpu_custom_call.1} parent=5 // pred_region
        // Predicated region
        $region45: #{tpu_custom_call.1} parent=43 // pred_check
          %p327 = pneg %p44
        $region46: #{tpu_custom_call.1} parent=43 // pred_check_branch
          %329 = sbr.rel (%p327) target = $region48
        $region47: #{tpu_custom_call.1} parent=43 // pred_region
          %s330 = sand.u32 %s34, 1
          %s331 = scalar_lea.sflag [#allocation3], %s330
          %s332 = sand.u32 %s34, 1
          %s333 = smul.addr %s332, 8
          %s334 = scalar_lea.vmem [#allocation2], %s333
          %s336 = ssub.s32 128, 128
          %337 = vsyncadd %s331, %s336
          %s338 = smul.addr %s24, 128
          %s339 = scalar_lea.hbm %s0, %s338
          %s341 = sshll.u32 %s334, 4
          %s342 = int_to_ptr.vmem [resolvable:$true] %s341
          %344 = dma.hbm_to_vmem [thread:$0]  %s339, 128, %s342, %s331
        $region48: #{tpu_custom_call.1} parent=43 // pred_fallthru
          _
      $region44: #{tpu_custom_call.1} parent=5 // pred_fallthru
        _
      %p345 = scmp.le.s32.totalorder 1, %s24
      %p346 = scmp.lt.s32.totalorder %s24, 3
      %p347 = pnand %p345, %p346
      %p348 = pneg %p347
      // Predicated region
      $region49: #{tpu_custom_call.1} parent=5 // pred_check
        _
      $region50: #{tpu_custom_call.1} parent=5 // pred_check_branch
        %350 = sbr.rel (%p347) target = $region52
      $region51: #{tpu_custom_call.1} parent=5 // pred_region
        %s351 = ssub.s32 %s24, 1
        %s352 = sand.u32 %s37, 1
        %s353 = scalar_lea.sflag [#allocation3], %s352
        %s354 = sand.u32 %s37, 1
        %s355 = smul.addr %s354, 8
        %s356 = scalar_lea.vmem [#allocation2], %s355
        // Predicated region
        $region53: #{tpu_custom_call.1} parent=51 // pred_check
          %p357 = pneg %p50
        $region54: #{tpu_custom_call.1} parent=51 // pred_check_branch
          %359 = sbr.rel (%p357) target = $region56
        $region55: #{tpu_custom_call.1} parent=51 // pred_region
          %360 = dma.done %s353, 128
        $region56: #{tpu_custom_call.1} parent=51 // pred_fallthru
          _
        // Predicated region
        $region57: #{tpu_custom_call.1} parent=51 // pred_check
          %p361 = pneg %p71
        $region58: #{tpu_custom_call.1} parent=51 // pred_check_branch
          %363 = sbr.rel (%p361) target = $region60
        $region59: #{tpu_custom_call.1} parent=51 // pred_region
          %364 = dma.done [#allocation6], 512
        $region60: #{tpu_custom_call.1} parent=51 // pred_fallthru
          _
        // Predicated region
        $region61: #{tpu_custom_call.1} parent=51 // pred_check
          %p365 = pneg %p92
        $region62: #{tpu_custom_call.1} parent=51 // pred_check_branch
          %367 = sbr.rel (%p365) target = $region64
        $region63: #{tpu_custom_call.1} parent=51 // pred_region
          %368 = dma.done [#allocation6], 512
        $region64: #{tpu_custom_call.1} parent=51 // pred_fallthru
          _
        // Predicated region
        $region65: #{tpu_custom_call.1} parent=51 // pred_check
          %p369 = pneg %p113
        $region66: #{tpu_custom_call.1} parent=51 // pred_check_branch
          %371 = sbr.rel (%p369) target = $region68
        $region67: #{tpu_custom_call.1} parent=51 // pred_region
          %372 = dma.done [#allocation9], 16
        $region68: #{tpu_custom_call.1} parent=51 // pred_fallthru
          _
        // Predicated region
        $region69: #{tpu_custom_call.1} parent=51 // pred_check
          %p373 = pneg %p134
        $region70: #{tpu_custom_call.1} parent=51 // pred_check_branch
          %375 = sbr.rel (%p373) target = $region72
        $region71: #{tpu_custom_call.1} parent=51 // pred_region
          %376 = dma.done [#allocation9], 512
        $region72: #{tpu_custom_call.1} parent=51 // pred_fallthru
          _
        // Predicated region
        $region73: #{tpu_custom_call.1} parent=51 // pred_check
          %p377 = pneg %p155
        $region74: #{tpu_custom_call.1} parent=51 // pred_check_branch
          %379 = sbr.rel (%p377) target = $region76
        $region75: #{tpu_custom_call.1} parent=51 // pred_region
          %380 = dma.done [#allocation12], 16
        $region76: #{tpu_custom_call.1} parent=51 // pred_fallthru
          _
        // Predicated region
        $region77: #{tpu_custom_call.1} parent=51 // pred_check
          %p381 = pneg %p176
        $region78: #{tpu_custom_call.1} parent=51 // pred_check_branch
          %383 = sbr.rel (%p381) target = $region80
        $region79: #{tpu_custom_call.1} parent=51 // pred_region
          %384 = dma.done [#allocation12], 2048
        $region80: #{tpu_custom_call.1} parent=51 // pred_fallthru
          _
        // Predicated region
        $region81: #{tpu_custom_call.1} parent=51 // pred_check
          %p385 = pneg %p197
        $region82: #{tpu_custom_call.1} parent=51 // pred_check_branch
          %387 = sbr.rel (%p385) target = $region84
        $region83: #{tpu_custom_call.1} parent=51 // pred_region
          %388 = dma.done [#allocation15], 16
        $region84: #{tpu_custom_call.1} parent=51 // pred_fallthru
          _
        %s389 = sand.u32 %s37, 1
        %s390 = scalar_lea.sflag [#allocation3], %s389
        %s391 = sand.u32 %s37, 1
        %s392 = smul.addr %s391, 8
        %s393 = scalar_lea.vmem [#allocation2], %s392
        %p394 = pneg %p50
        %p395 = pneg %p47
        %p396 = pneg %p71
        %p397 = pneg %p68
        %p398 = pneg %p92
        %p399 = pneg %p89
        %p400 = pneg %p113
        %p401 = pneg %p110
        %p402 = pneg %p134
        %p403 = pneg %p131
        %p404 = pneg %p155
        %p405 = pneg %p152
        %p406 = pneg %p176
        %p407 = pneg %p173
        %p408 = pneg %p197
        %p409 = pneg %p194
        %p410 = pneg %p223
        %p411 = pneg %p220
        %s412 = sand.u32 %s210, 1
        %s413 = scalar_lea.sflag [#allocation4], %s412
        %s414 = sand.u32 %s210, 1
        %s415 = smul.addr %s414, 8
        %s416 = scalar_lea.vmem [#allocation16], %s415
        %v417 = vld [vmem:[%s356] sm:$0xff]
        %v418 = vmul.f32 %v417, %v417
        %vm419 = vcmask 261120
        %v420 = vsel %vm419, %v418, 0.0
        %421 = vadd.xlane.f32.xlu0 %v420
        %v422 = vpop.xlane.xlu0 %421
        %v423 = vrcp.pop 32.0
        %v424 = vmul.f32 %v422, %v423
        %v425 = vrsqrt.pop %v424
        %v426 = vmul.f32 %v417, %v425
        %v427 = vld [vmem:[#allocation5] sm:$0xff]
        %v428 = vld [vmem:[#allocation5 + $0x8] sm:$0xff]
        %v429 = vld [vmem:[#allocation5 + $0x10] sm:$0xff]
        %v430 = vld [vmem:[#allocation5 + $0x18] sm:$0xff]
        %v432 = vsel %vm419, %v426, 0
        %434 = vmatprep.subr.mxu0 0.0
        %435 = vmatpush1.msra.mxu0 %v427
        %436 = vmatprep.subr.mxu0 0.0
        %437 = vmatpush1.msra.mxu0 %v428
        %438 = vmatprep.subr.mxu0 0.0
        %439 = vmatpush1.msra.mxu0 %v429
        %440 = vmatprep.subr.mxu0 0.0
        %441 = vmatpush1.msra.mxu0 %v430
        %442 = vmatprep.subr.mxu0 0.0
        %443 = vmatpush1.msra.mxu0 0.0
        %444 = vmatprep.subr.mxu0 0.0
        %445 = vmatpush1.msra.mxu0 0.0
        %446 = vmatprep.subr.mxu0 0.0
        %447 = vmatpush1.msra.mxu0 0.0
        %448 = vmatprep.subr.mxu0 0.0
        %449 = vmatpush1.msra.mxu0 0.0
        %450 = vmatprep.subr.mxu0 0.0
        %451 = vmatpush1.msra.mxu0 0.0
        %452 = vmatprep.subr.mxu0 0.0
        %453 = vmatpush1.msra.mxu0 0.0
        %454 = vmatprep.subr.mxu0 0.0
        %455 = vmatpush1.msra.mxu0 0.0
        %456 = vmatprep.subr.mxu0 0.0
        %457 = vmatpush1.msra.mxu0 0.0
        %458 = vmatprep.subr.mxu0 0.0
        %459 = vmatpush1.msra.mxu0 0.0
        %460 = vmatprep.subr.mxu0 0.0
        %461 = vmatpush1.msra.mxu0 0.0
        %462 = vmatprep.subr.mxu0 0.0
        %463 = vmatpush1.msra.mxu0 0.0
        %464 = vmatprep.subr.mxu0 0.0
        %465 = vmatpush1.msra.mxu0 0.0
        %466 = vmatprep.subr.mxu0 0.0
        %467 = vmatpush1.msra.mxu0 0.0
        %468 = vmatprep.subr.mxu0 0.0
        %469 = vmatpush1.msra.mxu0 0.0
        %470 = vmatprep.subr.mxu0 0.0
        %471 = vmatpush1.msra.mxu0 0.0
        %472 = vmatprep.subr.mxu0 0.0
        %473 = vmatpush1.msra.mxu0 0.0
        %474 = vmatprep.subr.mxu0 0.0
        %475 = vmatpush1.msra.mxu0 0.0
        %476 = vmatprep.subr.mxu0 0.0
        %477 = vmatpush1.msra.mxu0 0.0
        %478 = vmatprep.subr.mxu0 0.0
        %479 = vmatpush1.msra.mxu0 0.0
        %480 = vmatprep.subr.mxu0 0.0
        %481 = vmatpush1.msra.mxu0 0.0
        %482 = vmatprep.subr.mxu0 0.0
        %483 = vmatpush1.msra.mxu0 0.0
        %484 = vmatprep.subr.mxu0 0.0
        %485 = vmatpush1.msra.mxu0 0.0
        %486 = vmatprep.subr.mxu0 0.0
        %487 = vmatpush1.msra.mxu0 0.0
        %488 = vmatprep.subr.mxu0 0.0
        %489 = vmatpush1.msra.mxu0 0.0
        %490 = vmatprep.subr.mxu0 0.0
        %491 = vmatpush1.msra.mxu0 0.0
        %492 = vmatprep.subr.mxu0 0.0
        %493 = vmatpush1.msra.mxu0 0.0
        %494 = vmatprep.subr.mxu0 0.0
        %495 = vmatpush1.msra.mxu0 0.0
        %496 = vmatprep.subr.mxu0 0.0
        %497 = vmatpush1.msra.mxu0 0.0
        %498 = vmatprep.mubr.f32.mxu0 0.0
        %499 = vmatmul.mubr.f32.gmra.mrb[0].mxu0 %v432
        %v500 = vpop.f32.mrb[0].mxu0
        %v501 = vadd.f32 0.0, %v500
        %v502 = vpop.f32.mrb[0].mxu0
        %503 = vdwg.mxu0
        %v504 = vmax.f32 %v501, 0.0
        %v505 = vlaneseq
        %v506 = vshrl.u32 %v505, 7
        %v507 = vlaneseq
        %v508 = vand.u32 %v507, 127
        %vm509 = vcmp.ge.s32.totalorder %v506, %v508
        %511 = vrot.lane.b32.xlu0 %v504, 96
        %v512 = vpop.permute.xlu0 %511
        %vm513 = vcmask 64512
        %v514 = vsel %vm513, %v504, 0
        %v516 = vsel %vm513, %v512, 0
        %518 = vmatprep.subr.mxu0 0.0
        %519 = vmatpush1.xpose.msra.mxu0 %v516
        %520 = vmatprep.subr.mxu0 0.0
        %521 = vmatpush1.xpose.msra.mxu0 0.0
        %522 = vmatprep.subr.mxu0 0.0
        %523 = vmatpush1.xpose.msra.mxu0 0.0
        %524 = vmatprep.subr.mxu0 0.0
        %525 = vmatpush1.xpose.msra.mxu0 0.0
        %526 = vmatprep.subr.mxu0 0.0
        %527 = vmatpush1.xpose.msra.mxu0 0.0
        %528 = vmatprep.subr.mxu0 0.0
        %529 = vmatpush1.xpose.msra.mxu0 0.0
        %530 = vmatprep.subr.mxu0 0.0
        %531 = vmatpush1.xpose.msra.mxu0 0.0
        %532 = vmatprep.subr.mxu0 0.0
        %533 = vmatpush1.xpose.msra.mxu0 0.0
        %534 = vmatprep.subr.mxu0 0.0
        %535 = vmatpush1.xpose.msra.mxu0 0.0
        %536 = vmatprep.subr.mxu0 0.0
        %537 = vmatpush1.xpose.msra.mxu0 0.0
        %538 = vmatprep.subr.mxu0 0.0
        %539 = vmatpush1.xpose.msra.mxu0 0.0
        %540 = vmatprep.subr.mxu0 0.0
        %541 = vmatpush1.xpose.msra.mxu0 0.0
        %542 = vmatprep.subr.mxu0 0.0
        %543 = vmatpush1.xpose.msra.mxu0 0.0
        %544 = vmatprep.subr.mxu0 0.0
        %545 = vmatpush1.xpose.msra.mxu0 0.0
        %546 = vmatprep.subr.mxu0 0.0
        %547 = vmatpush1.xpose.msra.mxu0 0.0
        %548 = vmatprep.subr.mxu0 0.0
        %549 = vmatpush1.xpose.msra.mxu0 0.0
        %550 = vmatprep.subr.mxu0 0.0
        %551 = vmatpush1.xpose.msra.mxu0 0.0
        %552 = vmatprep.subr.mxu0 0.0
        %553 = vmatpush1.xpose.msra.mxu0 0.0
        %554 = vmatprep.subr.mxu0 0.0
        %555 = vmatpush1.xpose.msra.mxu0 0.0
        %556 = vmatprep.subr.mxu0 0.0
        %557 = vmatpush1.xpose.msra.mxu0 0.0
        %558 = vmatprep.subr.mxu0 0.0
        %559 = vmatpush1.xpose.msra.mxu0 0.0
        %560 = vmatprep.subr.mxu0 0.0
        %561 = vmatpush1.xpose.msra.mxu0 0.0
        %562 = vmatprep.subr.mxu0 0.0
        %563 = vmatpush1.xpose.msra.mxu0 0.0
        %564 = vmatprep.subr.mxu0 0.0
        %565 = vmatpush1.xpose.msra.mxu0 0.0
        %566 = vmatprep.subr.mxu0 0.0
        %567 = vmatpush1.xpose.msra.mxu0 0.0
        %568 = vmatprep.subr.mxu0 0.0
        %569 = vmatpush1.xpose.msra.mxu0 0.0
        %570 = vmatprep.subr.mxu0 0.0
        %571 = vmatpush1.xpose.msra.mxu0 0.0
        %572 = vmatprep.subr.mxu0 0.0
        %573 = vmatpush1.xpose.msra.mxu0 0.0
        %574 = vmatprep.subr.mxu0 0.0
        %575 = vmatpush1.xpose.msra.mxu0 0.0
        %576 = vmatprep.subr.mxu0 0.0
        %577 = vmatpush1.xpose.msra.mxu0 0.0
        %578 = vmatprep.subr.mxu0 0.0
        %579 = vmatpush1.xpose.msra.mxu0 0.0
        %580 = vmatprep.subr.mxu0 0.0
        %581 = vmatpush1.xpose.msra.mxu0 0.0
        %582 = vmatprep.mubr.f32.mxu0 0.0
        %583 = vmatmul.mubr.f32.gmra.mrb[0].mxu0 %v514
        %v584 = vpop.f32.mrb[0].mxu0
        %v585 = vadd.f32 0.0, %v584
        %v586 = vpop.f32.mrb[0].mxu0
        %587 = vdwg.mxu0
        %v588 = vsel %vm509, %v585, -inf
        %v589 = vsel %vm513, %v588, -inf
        %590 = vmax.xlane.f32.xlu0 %v589
        %v591 = vpop.xlane.xlu0 %590
        %v592 = vsub.f32 %v588, %v591
        %v593 = vmul.f32 %v592, 1.442695
        %v594 = vpow.pop %v593
        %v595 = vsel %vm513, %v594, 0.0
        %596 = vadd.xlane.f32.xlu0 %v595
        %v597 = vpop.xlane.xlu0 %596
        %v598 = vrcp.pop %v597
        %v599 = vmul.f32 %v594, %v598
        %601 = vrot.lane.b32.xlu0 %v501, 64
        %v602 = vpop.permute.xlu0 %601
        %v605 = vsel %vm513, %v599, 0
        %607 = vmatprep.subr.mxu0 0.0
        %608 = vmatpush1.msra.mxu0 %v602
        %609 = vmatprep.subr.mxu0 0.0
        %610 = vmatpush1.msra.mxu0 0.0
        %611 = vmatprep.subr.mxu0 0.0
        %612 = vmatpush1.msra.mxu0 0.0
        %613 = vmatprep.subr.mxu0 0.0
        %614 = vmatpush1.msra.mxu0 0.0
        %615 = vmatprep.subr.mxu0 0.0
        %616 = vmatpush1.msra.mxu0 0.0
        %617 = vmatprep.subr.mxu0 0.0
        %618 = vmatpush1.msra.mxu0 0.0
        %619 = vmatprep.subr.mxu0 0.0
        %620 = vmatpush1.msra.mxu0 0.0
        %621 = vmatprep.subr.mxu0 0.0
        %622 = vmatpush1.msra.mxu0 0.0
        %623 = vmatprep.subr.mxu0 0.0
        %624 = vmatpush1.msra.mxu0 0.0
        %625 = vmatprep.subr.mxu0 0.0
        %626 = vmatpush1.msra.mxu0 0.0
        %627 = vmatprep.subr.mxu0 0.0
        %628 = vmatpush1.msra.mxu0 0.0
        %629 = vmatprep.subr.mxu0 0.0
        %630 = vmatpush1.msra.mxu0 0.0
        %631 = vmatprep.subr.mxu0 0.0
        %632 = vmatpush1.msra.mxu0 0.0
        %633 = vmatprep.subr.mxu0 0.0
        %634 = vmatpush1.msra.mxu0 0.0
        %635 = vmatprep.subr.mxu0 0.0
        %636 = vmatpush1.msra.mxu0 0.0
        %637 = vmatprep.subr.mxu0 0.0
        %638 = vmatpush1.msra.mxu0 0.0
        %639 = vmatprep.subr.mxu0 0.0
        %640 = vmatpush1.msra.mxu0 0.0
        %641 = vmatprep.subr.mxu0 0.0
        %642 = vmatpush1.msra.mxu0 0.0
        %643 = vmatprep.subr.mxu0 0.0
        %644 = vmatpush1.msra.mxu0 0.0
        %645 = vmatprep.subr.mxu0 0.0
        %646 = vmatpush1.msra.mxu0 0.0
        %647 = vmatprep.subr.mxu0 0.0
        %648 = vmatpush1.msra.mxu0 0.0
        %649 = vmatprep.subr.mxu0 0.0
        %650 = vmatpush1.msra.mxu0 0.0
        %651 = vmatprep.subr.mxu0 0.0
        %652 = vmatpush1.msra.mxu0 0.0
        %653 = vmatprep.subr.mxu0 0.0
        %654 = vmatpush1.msra.mxu0 0.0
        %655 = vmatprep.subr.mxu0 0.0
        %656 = vmatpush1.msra.mxu0 0.0
        %657 = vmatprep.subr.mxu0 0.0
        %658 = vmatpush1.msra.mxu0 0.0
        %659 = vmatprep.subr.mxu0 0.0
        %660 = vmatpush1.msra.mxu0 0.0
        %661 = vmatprep.subr.mxu0 0.0
        %662 = vmatpush1.msra.mxu0 0.0
        %663 = vmatprep.subr.mxu0 0.0
        %664 = vmatpush1.msra.mxu0 0.0
        %665 = vmatprep.subr.mxu0 0.0
        %666 = vmatpush1.msra.mxu0 0.0
        %667 = vmatprep.subr.mxu0 0.0
        %668 = vmatpush1.msra.mxu0 0.0
        %669 = vmatprep.subr.mxu0 0.0
        %670 = vmatpush1.msra.mxu0 0.0
        %671 = vmatprep.mubr.f32.mxu0 0.0
        %672 = vmatmul.mubr.f32.gmra.mrb[0].mxu0 %v605
        %v673 = vpop.f32.mrb[0].mxu0
        %v674 = vadd.f32 0.0, %v673
        %v675 = vpop.f32.mrb[0].mxu0
        %676 = vdwg.mxu0
        %677 = vrot.lane.b32.xlu0 %v504, 120
        %v678 = vpop.permute.xlu0 %677
        %679 = vrot.lane.b32.xlu0 %v504, 88
        %v680 = vpop.permute.xlu0 %679
        %v681 = vsel %vm513, %v678, 0
        %v683 = vsel %vm513, %v680, 0
        %685 = vmatprep.subr.mxu0 0.0
        %686 = vmatpush1.xpose.msra.mxu0 %v683
        %687 = vmatprep.subr.mxu0 0.0
        %688 = vmatpush1.xpose.msra.mxu0 0.0
        %689 = vmatprep.subr.mxu0 0.0
        %690 = vmatpush1.xpose.msra.mxu0 0.0
        %691 = vmatprep.subr.mxu0 0.0
        %692 = vmatpush1.xpose.msra.mxu0 0.0
        %693 = vmatprep.subr.mxu0 0.0
        %694 = vmatpush1.xpose.msra.mxu0 0.0
        %695 = vmatprep.subr.mxu0 0.0
        %696 = vmatpush1.xpose.msra.mxu0 0.0
        %697 = vmatprep.subr.mxu0 0.0
        %698 = vmatpush1.xpose.msra.mxu0 0.0
        %699 = vmatprep.subr.mxu0 0.0
        %700 = vmatpush1.xpose.msra.mxu0 0.0
        %701 = vmatprep.subr.mxu0 0.0
        %702 = vmatpush1.xpose.msra.mxu0 0.0
        %703 = vmatprep.subr.mxu0 0.0
        %704 = vmatpush1.xpose.msra.mxu0 0.0
        %705 = vmatprep.subr.mxu0 0.0
        %706 = vmatpush1.xpose.msra.mxu0 0.0
        %707 = vmatprep.subr.mxu0 0.0
        %708 = vmatpush1.xpose.msra.mxu0 0.0
        %709 = vmatprep.subr.mxu0 0.0
        %710 = vmatpush1.xpose.msra.mxu0 0.0
        %711 = vmatprep.subr.mxu0 0.0
        %712 = vmatpush1.xpose.msra.mxu0 0.0
        %713 = vmatprep.subr.mxu0 0.0
        %714 = vmatpush1.xpose.msra.mxu0 0.0
        %715 = vmatprep.subr.mxu0 0.0
        %716 = vmatpush1.xpose.msra.mxu0 0.0
        %717 = vmatprep.subr.mxu0 0.0
        %718 = vmatpush1.xpose.msra.mxu0 0.0
        %719 = vmatprep.subr.mxu0 0.0
        %720 = vmatpush1.xpose.msra.mxu0 0.0
        %721 = vmatprep.subr.mxu0 0.0
        %722 = vmatpush1.xpose.msra.mxu0 0.0
        %723 = vmatprep.subr.mxu0 0.0
        %724 = vmatpush1.xpose.msra.mxu0 0.0
        %725 = vmatprep.subr.mxu0 0.0
        %726 = vmatpush1.xpose.msra.mxu0 0.0
        %727 = vmatprep.subr.mxu0 0.0
        %728 = vmatpush1.xpose.msra.mxu0 0.0
        %729 = vmatprep.subr.mxu0 0.0
        %730 = vmatpush1.xpose.msra.mxu0 0.0
        %731 = vmatprep.subr.mxu0 0.0
        %732 = vmatpush1.xpose.msra.mxu0 0.0
        %733 = vmatprep.subr.mxu0 0.0
        %734 = vmatpush1.xpose.msra.mxu0 0.0
        %735 = vmatprep.subr.mxu0 0.0
        %736 = vmatpush1.xpose.msra.mxu0 0.0
        %737 = vmatprep.subr.mxu0 0.0
        %738 = vmatpush1.xpose.msra.mxu0 0.0
        %739 = vmatprep.subr.mxu0 0.0
        %740 = vmatpush1.xpose.msra.mxu0 0.0
        %741 = vmatprep.subr.mxu0 0.0
        %742 = vmatpush1.xpose.msra.mxu0 0.0
        %743 = vmatprep.subr.mxu0 0.0
        %744 = vmatpush1.xpose.msra.mxu0 0.0
        %745 = vmatprep.subr.mxu0 0.0
        %746 = vmatpush1.xpose.msra.mxu0 0.0
        %747 = vmatprep.subr.mxu0 0.0
        %748 = vmatpush1.xpose.msra.mxu0 0.0
        %749 = vmatprep.mubr.f32.mxu0 0.0
        %750 = vmatmul.mubr.f32.gmra.mrb[0].mxu0 %v681
        %v751 = vpop.f32.mrb[0].mxu0
        %v752 = vadd.f32 0.0, %v751
        %v753 = vpop.f32.mrb[0].mxu0
        %754 = vdwg.mxu0
        %v755 = vsel %vm509, %v752, -inf
        %v756 = vsel %vm513, %v755, -inf
        %757 = vmax.xlane.f32.xlu0 %v756
        %v758 = vpop.xlane.xlu0 %757
        %v759 = vsub.f32 %v755, %v758
        %v760 = vmul.f32 %v759, 1.442695
        %v761 = vpow.pop %v760
        %v762 = vsel %vm513, %v761, 0.0
        %763 = vadd.xlane.f32.xlu0 %v762
        %v764 = vpop.xlane.xlu0 %763
        %v765 = vrcp.pop %v764
        %v766 = vmul.f32 %v761, %v765
        %767 = vrot.lane.b32.xlu0 %v501, 56
        %v768 = vpop.permute.xlu0 %767
        %v771 = vsel %vm513, %v766, 0
        %773 = vmatprep.subr.mxu0 0.0
        %774 = vmatpush1.msra.mxu0 %v768
        %775 = vmatprep.subr.mxu0 0.0
        %776 = vmatpush1.msra.mxu0 0.0
        %777 = vmatprep.subr.mxu0 0.0
        %778 = vmatpush1.msra.mxu0 0.0
        %779 = vmatprep.subr.mxu0 0.0
        %780 = vmatpush1.msra.mxu0 0.0
        %781 = vmatprep.subr.mxu0 0.0
        %782 = vmatpush1.msra.mxu0 0.0
        %783 = vmatprep.subr.mxu0 0.0
        %784 = vmatpush1.msra.mxu0 0.0
        %785 = vmatprep.subr.mxu0 0.0
        %786 = vmatpush1.msra.mxu0 0.0
        %787 = vmatprep.subr.mxu0 0.0
        %788 = vmatpush1.msra.mxu0 0.0
        %789 = vmatprep.subr.mxu0 0.0
        %790 = vmatpush1.msra.mxu0 0.0
        %791 = vmatprep.subr.mxu0 0.0
        %792 = vmatpush1.msra.mxu0 0.0
        %793 = vmatprep.subr.mxu0 0.0
        %794 = vmatpush1.msra.mxu0 0.0
        %795 = vmatprep.subr.mxu0 0.0
        %796 = vmatpush1.msra.mxu0 0.0
        %797 = vmatprep.subr.mxu0 0.0
        %798 = vmatpush1.msra.mxu0 0.0
        %799 = vmatprep.subr.mxu0 0.0
        %800 = vmatpush1.msra.mxu0 0.0
        %801 = vmatprep.subr.mxu0 0.0
        %802 = vmatpush1.msra.mxu0 0.0
        %803 = vmatprep.subr.mxu0 0.0
        %804 = vmatpush1.msra.mxu0 0.0
        %805 = vmatprep.subr.mxu0 0.0
        %806 = vmatpush1.msra.mxu0 0.0
        %807 = vmatprep.subr.mxu0 0.0
        %808 = vmatpush1.msra.mxu0 0.0
        %809 = vmatprep.subr.mxu0 0.0
        %810 = vmatpush1.msra.mxu0 0.0
        %811 = vmatprep.subr.mxu0 0.0
        %812 = vmatpush1.msra.mxu0 0.0
        %813 = vmatprep.subr.mxu0 0.0
        %814 = vmatpush1.msra.mxu0 0.0
        %815 = vmatprep.subr.mxu0 0.0
        %816 = vmatpush1.msra.mxu0 0.0
        %817 = vmatprep.subr.mxu0 0.0
        %818 = vmatpush1.msra.mxu0 0.0
        %819 = vmatprep.subr.mxu0 0.0
        %820 = vmatpush1.msra.mxu0 0.0
        %821 = vmatprep.subr.mxu0 0.0
        %822 = vmatpush1.msra.mxu0 0.0
        %823 = vmatprep.subr.mxu0 0.0
        %824 = vmatpush1.msra.mxu0 0.0
        %825 = vmatprep.subr.mxu0 0.0
        %826 = vmatpush1.msra.mxu0 0.0
        %827 = vmatprep.subr.mxu0 0.0
        %828 = vmatpush1.msra.mxu0 0.0
        %829 = vmatprep.subr.mxu0 0.0
        %830 = vmatpush1.msra.mxu0 0.0
        %831 = vmatprep.subr.mxu0 0.0
        %832 = vmatpush1.msra.mxu0 0.0
        %833 = vmatprep.subr.mxu0 0.0
        %834 = vmatpush1.msra.mxu0 0.0
        %835 = vmatprep.subr.mxu0 0.0
        %836 = vmatpush1.msra.mxu0 0.0
        %837 = vmatprep.mubr.f32.mxu0 0.0
        %838 = vmatmul.mubr.f32.gmra.mrb[0].mxu0 %v771
        %v839 = vpop.f32.mrb[0].mxu0
        %v840 = vadd.f32 0.0, %v839
        %v841 = vpop.f32.mrb[0].mxu0
        %842 = vdwg.mxu0
        %843 = vrot.lane.b32.xlu0 %v504, 112
        %v844 = vpop.permute.xlu0 %843
        %845 = vrot.lane.b32.xlu0 %v504, 80
        %v846 = vpop.permute.xlu0 %845
        %v847 = vsel %vm513, %v844, 0
        %v849 = vsel %vm513, %v846, 0
        %851 = vmatprep.subr.mxu0 0.0
        %852 = vmatpush1.xpose.msra.mxu0 %v849
        %853 = vmatprep.subr.mxu0 0.0
        %854 = vmatpush1.xpose.msra.mxu0 0.0
        %855 = vmatprep.subr.mxu0 0.0
        %856 = vmatpush1.xpose.msra.mxu0 0.0
        %857 = vmatprep.subr.mxu0 0.0
        %858 = vmatpush1.xpose.msra.mxu0 0.0
        %859 = vmatprep.subr.mxu0 0.0
        %860 = vmatpush1.xpose.msra.mxu0 0.0
        %861 = vmatprep.subr.mxu0 0.0
        %862 = vmatpush1.xpose.msra.mxu0 0.0
        %863 = vmatprep.subr.mxu0 0.0
        %864 = vmatpush1.xpose.msra.mxu0 0.0
        %865 = vmatprep.subr.mxu0 0.0
        %866 = vmatpush1.xpose.msra.mxu0 0.0
        %867 = vmatprep.subr.mxu0 0.0
        %868 = vmatpush1.xpose.msra.mxu0 0.0
        %869 = vmatprep.subr.mxu0 0.0
        %870 = vmatpush1.xpose.msra.mxu0 0.0
        %871 = vmatprep.subr.mxu0 0.0
        %872 = vmatpush1.xpose.msra.mxu0 0.0
        %873 = vmatprep.subr.mxu0 0.0
        %874 = vmatpush1.xpose.msra.mxu0 0.0
        %875 = vmatprep.subr.mxu0 0.0
        %876 = vmatpush1.xpose.msra.mxu0 0.0
        %877 = vmatprep.subr.mxu0 0.0
        %878 = vmatpush1.xpose.msra.mxu0 0.0
        %879 = vmatprep.subr.mxu0 0.0
        %880 = vmatpush1.xpose.msra.mxu0 0.0
        %881 = vmatprep.subr.mxu0 0.0
        %882 = vmatpush1.xpose.msra.mxu0 0.0
        %883 = vmatprep.subr.mxu0 0.0
        %884 = vmatpush1.xpose.msra.mxu0 0.0
        %885 = vmatprep.subr.mxu0 0.0
        %886 = vmatpush1.xpose.msra.mxu0 0.0
        %887 = vmatprep.subr.mxu0 0.0
        %888 = vmatpush1.xpose.msra.mxu0 0.0
        %889 = vmatprep.subr.mxu0 0.0
        %890 = vmatpush1.xpose.msra.mxu0 0.0
        %891 = vmatprep.subr.mxu0 0.0
        %892 = vmatpush1.xpose.msra.mxu0 0.0
        %893 = vmatprep.subr.mxu0 0.0
        %894 = vmatpush1.xpose.msra.mxu0 0.0
        %895 = vmatprep.subr.mxu0 0.0
        %896 = vmatpush1.xpose.msra.mxu0 0.0
        %897 = vmatprep.subr.mxu0 0.0
        %898 = vmatpush1.xpose.msra.mxu0 0.0
        %899 = vmatprep.subr.mxu0 0.0
        %900 = vmatpush1.xpose.msra.mxu0 0.0
        %901 = vmatprep.subr.mxu0 0.0
        %902 = vmatpush1.xpose.msra.mxu0 0.0
        %903 = vmatprep.subr.mxu0 0.0
        %904 = vmatpush1.xpose.msra.mxu0 0.0
        %905 = vmatprep.subr.mxu0 0.0
        %906 = vmatpush1.xpose.msra.mxu0 0.0
        %907 = vmatprep.subr.mxu0 0.0
        %908 = vmatpush1.xpose.msra.mxu0 0.0
        %909 = vmatprep.subr.mxu0 0.0
        %910 = vmatpush1.xpose.msra.mxu0 0.0
        %911 = vmatprep.subr.mxu0 0.0
        %912 = vmatpush1.xpose.msra.mxu0 0.0
        %913 = vmatprep.subr.mxu0 0.0
        %914 = vmatpush1.xpose.msra.mxu0 0.0
        %915 = vmatprep.mubr.f32.mxu0 0.0
        %916 = vmatmul.mubr.f32.gmra.mrb[0].mxu0 %v847
        %v917 = vpop.f32.mrb[0].mxu0
        %v918 = vadd.f32 0.0, %v917
        %v919 = vpop.f32.mrb[0].mxu0
        %920 = vdwg.mxu0
        %v921 = vsel %vm509, %v918, -inf
        %v922 = vsel %vm513, %v921, -inf
        %923 = vmax.xlane.f32.xlu0 %v922
        %v924 = vpop.xlane.xlu0 %923
        %v925 = vsub.f32 %v921, %v924
        %v926 = vmul.f32 %v925, 1.442695
        %v927 = vpow.pop %v926
        %v928 = vsel %vm513, %v927, 0.0
        %929 = vadd.xlane.f32.xlu0 %v928
        %v930 = vpop.xlane.xlu0 %929
        %v931 = vrcp.pop %v930
        %v932 = vmul.f32 %v927, %v931
        %933 = vrot.lane.b32.xlu0 %v501, 48
        %v934 = vpop.permute.xlu0 %933
        %v937 = vsel %vm513, %v932, 0
        %939 = vmatprep.subr.mxu0 0.0
        %940 = vmatpush1.msra.mxu0 %v934
        %941 = vmatprep.subr.mxu0 0.0
        %942 = vmatpush1.msra.mxu0 0.0
        %943 = vmatprep.subr.mxu0 0.0
        %944 = vmatpush1.msra.mxu0 0.0
        %945 = vmatprep.subr.mxu0 0.0
        %946 = vmatpush1.msra.mxu0 0.0
        %947 = vmatprep.subr.mxu0 0.0
        %948 = vmatpush1.msra.mxu0 0.0
        %949 = vmatprep.subr.mxu0 0.0
        %950 = vmatpush1.msra.mxu0 0.0
        %951 = vmatprep.subr.mxu0 0.0
        %952 = vmatpush1.msra.mxu0 0.0
        %953 = vmatprep.subr.mxu0 0.0
        %954 = vmatpush1.msra.mxu0 0.0
        %955 = vmatprep.subr.mxu0 0.0
        %956 = vmatpush1.msra.mxu0 0.0
        %957 = vmatprep.subr.mxu0 0.0
        %958 = vmatpush1.msra.mxu0 0.0
        %959 = vmatprep.subr.mxu0 0.0
        %960 = vmatpush1.msra.mxu0 0.0
        %961 = vmatprep.subr.mxu0 0.0
        %962 = vmatpush1.msra.mxu0 0.0
        %963 = vmatprep.subr.mxu0 0.0
        %964 = vmatpush1.msra.mxu0 0.0
        %965 = vmatprep.subr.mxu0 0.0
        %966 = vmatpush1.msra.mxu0 0.0
        %967 = vmatprep.subr.mxu0 0.0
        %968 = vmatpush1.msra.mxu0 0.0
        %969 = vmatprep.subr.mxu0 0.0
        %970 = vmatpush1.msra.mxu0 0.0
        %971 = vmatprep.subr.mxu0 0.0
        %972 = vmatpush1.msra.mxu0 0.0
        %973 = vmatprep.subr.mxu0 0.0
        %974 = vmatpush1.msra.mxu0 0.0
        %975 = vmatprep.subr.mxu0 0.0
        %976 = vmatpush1.msra.mxu0 0.0
        %977 = vmatprep.subr.mxu0 0.0
        %978 = vmatpush1.msra.mxu0 0.0
        %979 = vmatprep.subr.mxu0 0.0
        %980 = vmatpush1.msra.mxu0 0.0
        %981 = vmatprep.subr.mxu0 0.0
        %982 = vmatpush1.msra.mxu0 0.0
        %983 = vmatprep.subr.mxu0 0.0
        %984 = vmatpush1.msra.mxu0 0.0
        %985 = vmatprep.subr.mxu0 0.0
        %986 = vmatpush1.msra.mxu0 0.0
        %987 = vmatprep.subr.mxu0 0.0
        %988 = vmatpush1.msra.mxu0 0.0
        %989 = vmatprep.subr.mxu0 0.0
        %990 = vmatpush1.msra.mxu0 0.0
        %991 = vmatprep.subr.mxu0 0.0
        %992 = vmatpush1.msra.mxu0 0.0
        %993 = vmatprep.subr.mxu0 0.0
        %994 = vmatpush1.msra.mxu0 0.0
        %995 = vmatprep.subr.mxu0 0.0
        %996 = vmatpush1.msra.mxu0 0.0
        %997 = vmatprep.subr.mxu0 0.0
        %998 = vmatpush1.msra.mxu0 0.0
        %999 = vmatprep.subr.mxu0 0.0
        %1000 = vmatpush1.msra.mxu0 0.0
        %1001 = vmatprep.subr.mxu0 0.0
        %1002 = vmatpush1.msra.mxu0 0.0
        %1003 = vmatprep.mubr.f32.mxu0 0.0
        %1004 = vmatmul.mubr.f32.gmra.mrb[0].mxu0 %v937
        %v1005 = vpop.f32.mrb[0].mxu0
        %v1006 = vadd.f32 0.0, %v1005
        %v1007 = vpop.f32.mrb[0].mxu0
        %1008 = vdwg.mxu0
        %1009 = vrot.lane.b32.xlu0 %v504, 104
        %v1010 = vpop.permute.xlu0 %1009
        %1011 = vrot.lane.b32.xlu0 %v504, 72
        %v1012 = vpop.permute.xlu0 %1011
        %v1013 = vsel %vm513, %v1010, 0
        %v1015 = vsel %vm513, %v1012, 0
        %1017 = vmatprep.subr.mxu0 0.0
        %1018 = vmatpush1.xpose.msra.mxu0 %v1015
        %1019 = vmatprep.subr.mxu0 0.0
        %1020 = vmatpush1.xpose.msra.mxu0 0.0
        %1021 = vmatprep.subr.mxu0 0.0
        %1022 = vmatpush1.xpose.msra.mxu0 0.0
        %1023 = vmatprep.subr.mxu0 0.0
        %1024 = vmatpush1.xpose.msra.mxu0 0.0
        %1025 = vmatprep.subr.mxu0 0.0
        %1026 = vmatpush1.xpose.msra.mxu0 0.0
        %1027 = vmatprep.subr.mxu0 0.0
        %1028 = vmatpush1.xpose.msra.mxu0 0.0
        %1029 = vmatprep.subr.mxu0 0.0
        %1030 = vmatpush1.xpose.msra.mxu0 0.0
        %1031 = vmatprep.subr.mxu0 0.0
        %1032 = vmatpush1.xpose.msra.mxu0 0.0
        %1033 = vmatprep.subr.mxu0 0.0
        %1034 = vmatpush1.xpose.msra.mxu0 0.0
        %1035 = vmatprep.subr.mxu0 0.0
        %1036 = vmatpush1.xpose.msra.mxu0 0.0
        %1037 = vmatprep.subr.mxu0 0.0
        %1038 = vmatpush1.xpose.msra.mxu0 0.0
        %1039 = vmatprep.subr.mxu0 0.0
        %1040 = vmatpush1.xpose.msra.mxu0 0.0
        %1041 = vmatprep.subr.mxu0 0.0
        %1042 = vmatpush1.xpose.msra.mxu0 0.0
        %1043 = vmatprep.subr.mxu0 0.0
        %1044 = vmatpush1.xpose.msra.mxu0 0.0
        %1045 = vmatprep.subr.mxu0 0.0
        %1046 = vmatpush1.xpose.msra.mxu0 0.0
        %1047 = vmatprep.subr.mxu0 0.0
        %1048 = vmatpush1.xpose.msra.mxu0 0.0
        %1049 = vmatprep.subr.mxu0 0.0
        %1050 = vmatpush1.xpose.msra.mxu0 0.0
        %1051 = vmatprep.subr.mxu0 0.0
        %1052 = vmatpush1.xpose.msra.mxu0 0.0
        %1053 = vmatprep.subr.mxu0 0.0
        %1054 = vmatpush1.xpose.msra.mxu0 0.0
        %1055 = vmatprep.subr.mxu0 0.0
        %1056 = vmatpush1.xpose.msra.mxu0 0.0
        %1057 = vmatprep.subr.mxu0 0.0
        %1058 = vmatpush1.xpose.msra.mxu0 0.0
        %1059 = vmatprep.subr.mxu0 0.0
        %1060 = vmatpush1.xpose.msra.mxu0 0.0
        %1061 = vmatprep.subr.mxu0 0.0
        %1062 = vmatpush1.xpose.msra.mxu0 0.0
        %1063 = vmatprep.subr.mxu0 0.0
        %1064 = vmatpush1.xpose.msra.mxu0 0.0
        %1065 = vmatprep.subr.mxu0 0.0
        %1066 = vmatpush1.xpose.msra.mxu0 0.0
        %1067 = vmatprep.subr.mxu0 0.0
        %1068 = vmatpush1.xpose.msra.mxu0 0.0
        %1069 = vmatprep.subr.mxu0 0.0
        %1070 = vmatpush1.xpose.msra.mxu0 0.0
        %1071 = vmatprep.subr.mxu0 0.0
        %1072 = vmatpush1.xpose.msra.mxu0 0.0
        %1073 = vmatprep.subr.mxu0 0.0
        %1074 = vmatpush1.xpose.msra.mxu0 0.0
        %1075 = vmatprep.subr.mxu0 0.0
        %1076 = vmatpush1.xpose.msra.mxu0 0.0
        %1077 = vmatprep.subr.mxu0 0.0
        %1078 = vmatpush1.xpose.msra.mxu0 0.0
        %1079 = vmatprep.subr.mxu0 0.0
        %1080 = vmatpush1.xpose.msra.mxu0 0.0
        %1081 = vmatprep.mubr.f32.mxu0 0.0
        %1082 = vmatmul.mubr.f32.gmra.mrb[0].mxu0 %v1013
        %v1083 = vpop.f32.mrb[0].mxu0
        %v1084 = vadd.f32 0.0, %v1083
        %v1085 = vpop.f32.mrb[0].mxu0
        %1086 = vdwg.mxu0
        %v1087 = vsel %vm509, %v1084, -inf
        %v1088 = vsel %vm513, %v1087, -inf
        %1089 = vmax.xlane.f32.xlu0 %v1088
        %v1090 = vpop.xlane.xlu0 %1089
        %v1091 = vsub.f32 %v1087, %v1090
        %v1092 = vmul.f32 %v1091, 1.442695
        %v1093 = vpow.pop %v1092
        %v1094 = vsel %vm513, %v1093, 0.0
        %1095 = vadd.xlane.f32.xlu0 %v1094
        %v1096 = vpop.xlane.xlu0 %1095
        %v1097 = vrcp.pop %v1096
        %v1098 = vmul.f32 %v1093, %v1097
        %1099 = vrot.lane.b32.xlu0 %v501, 40
        %v1100 = vpop.permute.xlu0 %1099
        %v1103 = vsel %vm513, %v1098, 0
        %1105 = vmatprep.subr.mxu0 0.0
        %1106 = vmatpush1.msra.mxu0 %v1100
        %1107 = vmatprep.subr.mxu0 0.0
        %1108 = vmatpush1.msra.mxu0 0.0
        %1109 = vmatprep.subr.mxu0 0.0
        %1110 = vmatpush1.msra.mxu0 0.0
        %1111 = vmatprep.subr.mxu0 0.0
        %1112 = vmatpush1.msra.mxu0 0.0
        %1113 = vmatprep.subr.mxu0 0.0
        %1114 = vmatpush1.msra.mxu0 0.0
        %1115 = vmatprep.subr.mxu0 0.0
        %1116 = vmatpush1.msra.mxu0 0.0
        %1117 = vmatprep.subr.mxu0 0.0
        %1118 = vmatpush1.msra.mxu0 0.0
        %1119 = vmatprep.subr.mxu0 0.0
        %1120 = vmatpush1.msra.mxu0 0.0
        %1121 = vmatprep.subr.mxu0 0.0
        %1122 = vmatpush1.msra.mxu0 0.0
        %1123 = vmatprep.subr.mxu0 0.0
        %1124 = vmatpush1.msra.mxu0 0.0
        %1125 = vmatprep.subr.mxu0 0.0
        %1126 = vmatpush1.msra.mxu0 0.0
        %1127 = vmatprep.subr.mxu0 0.0
        %1128 = vmatpush1.msra.mxu0 0.0
        %1129 = vmatprep.subr.mxu0 0.0
        %1130 = vmatpush1.msra.mxu0 0.0
        %1131 = vmatprep.subr.mxu0 0.0
        %1132 = vmatpush1.msra.mxu0 0.0
        %1133 = vmatprep.subr.mxu0 0.0
        %1134 = vmatpush1.msra.mxu0 0.0
        %1135 = vmatprep.subr.mxu0 0.0
        %1136 = vmatpush1.msra.mxu0 0.0
        %1137 = vmatprep.subr.mxu0 0.0
        %1138 = vmatpush1.msra.mxu0 0.0
        %1139 = vmatprep.subr.mxu0 0.0
        %1140 = vmatpush1.msra.mxu0 0.0
        %1141 = vmatprep.subr.mxu0 0.0
        %1142 = vmatpush1.msra.mxu0 0.0
        %1143 = vmatprep.subr.mxu0 0.0
        %1144 = vmatpush1.msra.mxu0 0.0
        %1145 = vmatprep.subr.mxu0 0.0
        %1146 = vmatpush1.msra.mxu0 0.0
        %1147 = vmatprep.subr.mxu0 0.0
        %1148 = vmatpush1.msra.mxu0 0.0
        %1149 = vmatprep.subr.mxu0 0.0
        %1150 = vmatpush1.msra.mxu0 0.0
        %1151 = vmatprep.subr.mxu0 0.0
        %1152 = vmatpush1.msra.mxu0 0.0
        %1153 = vmatprep.subr.mxu0 0.0
        %1154 = vmatpush1.msra.mxu0 0.0
        %1155 = vmatprep.subr.mxu0 0.0
        %1156 = vmatpush1.msra.mxu0 0.0
        %1157 = vmatprep.subr.mxu0 0.0
        %1158 = vmatpush1.msra.mxu0 0.0
        %1159 = vmatprep.subr.mxu0 0.0
        %1160 = vmatpush1.msra.mxu0 0.0
        %1161 = vmatprep.subr.mxu0 0.0
        %1162 = vmatpush1.msra.mxu0 0.0
        %1163 = vmatprep.subr.mxu0 0.0
        %1164 = vmatpush1.msra.mxu0 0.0
        %1165 = vmatprep.subr.mxu0 0.0
        %1166 = vmatpush1.msra.mxu0 0.0
        %1167 = vmatprep.subr.mxu0 0.0
        %1168 = vmatpush1.msra.mxu0 0.0
        %1169 = vmatprep.mubr.f32.mxu0 0.0
        %1170 = vmatmul.mubr.f32.gmra.mrb[0].mxu0 %v1103
        %v1171 = vpop.f32.mrb[0].mxu0
        %v1172 = vadd.f32 0.0, %v1171
        %v1173 = vpop.f32.mrb[0].mxu0
        %1174 = vdwg.mxu0
        %1176 = vrot.lane.b32.xlu0 %v840, 8
        %v1177 = vpop.permute.xlu0 %1176
        %1180 = vrot.lane.b32.xlu0 %v1006, 16
        %v1181 = vpop.permute.xlu0 %1180
        %1184 = vrot.lane.b32.xlu0 %v1172, 24
        %v1185 = vpop.permute.xlu0 %1184
        %v1187 = vsel %vm513, %v674, %v1177
        %vm1188 = vcmask 130048
        %v1189 = vsel %vm1188, %v1187, %v1181
        %vm1190 = vcmask 195584
        %v1191 = vsel %vm1190, %v1189, %v1185
        %v1192 = vld [vmem:[#allocation7] sm:$0xff]
        %v1193 = vld [vmem:[#allocation7 + $0x8] sm:$0xff]
        %v1194 = vld [vmem:[#allocation7 + $0x10] sm:$0xff]
        %v1195 = vld [vmem:[#allocation7 + $0x18] sm:$0xff]
        %v1196 = vld [vmem:[#allocation8] sm:$0x1]
        %v1198 = vlaneseq
        %v1199 = vshrl.u32 %v1198, 7
        %v1200 = vsub.s32 0, %v1199
        %v1201 = vrot.slane %v1196, %v1200
        %v1204 = vsel %vm419, %v1191, 0
        %1206 = vmatprep.subr.mxu0 0.0
        %1207 = vmatpush1.msra.mxu0 %v1192
        %1208 = vmatprep.subr.mxu0 0.0
        %1209 = vmatpush1.msra.mxu0 %v1193
        %1210 = vmatprep.subr.mxu0 0.0
        %1211 = vmatpush1.msra.mxu0 %v1194
        %1212 = vmatprep.subr.mxu0 0.0
        %1213 = vmatpush1.msra.mxu0 %v1195
        %1214 = vmatprep.subr.mxu0 0.0
        %1215 = vmatpush1.msra.mxu0 0.0
        %1216 = vmatprep.subr.mxu0 0.0
        %1217 = vmatpush1.msra.mxu0 0.0
        %1218 = vmatprep.subr.mxu0 0.0
        %1219 = vmatpush1.msra.mxu0 0.0
        %1220 = vmatprep.subr.mxu0 0.0
        %1221 = vmatpush1.msra.mxu0 0.0
        %1222 = vmatprep.subr.mxu0 0.0
        %1223 = vmatpush1.msra.mxu0 0.0
        %1224 = vmatprep.subr.mxu0 0.0
        %1225 = vmatpush1.msra.mxu0 0.0
        %1226 = vmatprep.subr.mxu0 0.0
        %1227 = vmatpush1.msra.mxu0 0.0
        %1228 = vmatprep.subr.mxu0 0.0
        %1229 = vmatpush1.msra.mxu0 0.0
        %1230 = vmatprep.subr.mxu0 0.0
        %1231 = vmatpush1.msra.mxu0 0.0
        %1232 = vmatprep.subr.mxu0 0.0
        %1233 = vmatpush1.msra.mxu0 0.0
        %1234 = vmatprep.subr.mxu0 0.0
        %1235 = vmatpush1.msra.mxu0 0.0
        %1236 = vmatprep.subr.mxu0 0.0
        %1237 = vmatpush1.msra.mxu0 0.0
        %1238 = vmatprep.subr.mxu0 0.0
        %1239 = vmatpush1.msra.mxu0 0.0
        %1240 = vmatprep.subr.mxu0 0.0
        %1241 = vmatpush1.msra.mxu0 0.0
        %1242 = vmatprep.subr.mxu0 0.0
        %1243 = vmatpush1.msra.mxu0 0.0
        %1244 = vmatprep.subr.mxu0 0.0
        %1245 = vmatpush1.msra.mxu0 0.0
        %1246 = vmatprep.subr.mxu0 0.0
        %1247 = vmatpush1.msra.mxu0 0.0
        %1248 = vmatprep.subr.mxu0 0.0
        %1249 = vmatpush1.msra.mxu0 0.0
        %1250 = vmatprep.subr.mxu0 0.0
        %1251 = vmatpush1.msra.mxu0 0.0
        %1252 = vmatprep.subr.mxu0 0.0
        %1253 = vmatpush1.msra.mxu0 0.0
        %1254 = vmatprep.subr.mxu0 0.0
        %1255 = vmatpush1.msra.mxu0 0.0
        %1256 = vmatprep.subr.mxu0 0.0
        %1257 = vmatpush1.msra.mxu0 0.0
        %1258 = vmatprep.subr.mxu0 0.0
        %1259 = vmatpush1.msra.mxu0 0.0
        %1260 = vmatprep.subr.mxu0 0.0
        %1261 = vmatpush1.msra.mxu0 0.0
        %1262 = vmatprep.subr.mxu0 0.0
        %1263 = vmatpush1.msra.mxu0 0.0
        %1264 = vmatprep.subr.mxu0 0.0
        %1265 = vmatpush1.msra.mxu0 0.0
        %1266 = vmatprep.subr.mxu0 0.0
        %1267 = vmatpush1.msra.mxu0 0.0
        %1268 = vmatprep.subr.mxu0 0.0
        %1269 = vmatpush1.msra.mxu0 0.0
        %1270 = vmatprep.mubr.f32.mxu0 0.0
        %1271 = vmatmul.mubr.f32.gmra.mrb[0].mxu0 %v1204
        %v1272 = vpop.f32.mrb[0].mxu0
        %v1273 = vadd.f32 %v1201, %v1272
        %v1274 = vpop.f32.mrb[0].mxu0
        %1275 = vdwg.mxu0
        %v1276 = vadd.f32 %v417, %v1273
        %v1277 = vmul.f32 %v1276, %v1276
        %v1278 = vsel %vm419, %v1277, 0.0
        %1279 = vadd.xlane.f32.xlu0 %v1278
        %v1280 = vpop.xlane.xlu0 %1279
        %v1281 = vmul.f32 %v1280, %v423
        %v1282 = vrsqrt.pop %v1281
        %v1283 = vmul.f32 %v1276, %v1282
        %v1284 = vld [vmem:[#allocation10] sm:$0xff]
        %v1285 = vld [vmem:[#allocation10 + $0x8] sm:$0xff]
        %v1286 = vld [vmem:[#allocation10 + $0x10] sm:$0xff]
        %v1287 = vld [vmem:[#allocation10 + $0x18] sm:$0xff]
        %v1288 = vld [vmem:[#allocation11] sm:$0x1]
        %v1290 = vlaneseq
        %v1291 = vshrl.u32 %v1290, 7
        %v1292 = vsub.s32 0, %v1291
        %v1293 = vrot.slane %v1288, %v1292
        %v1296 = vsel %vm419, %v1283, 0
        %1298 = vmatprep.subr.mxu0 0.0
        %1299 = vmatpush1.msra.mxu0 %v1284
        %1300 = vmatprep.subr.mxu0 0.0
        %1301 = vmatpush1.msra.mxu0 %v1285
        %1302 = vmatprep.subr.mxu0 0.0
        %1303 = vmatpush1.msra.mxu0 %v1286
        %1304 = vmatprep.subr.mxu0 0.0
        %1305 = vmatpush1.msra.mxu0 %v1287
        %1306 = vmatprep.subr.mxu0 0.0
        %1307 = vmatpush1.msra.mxu0 0.0
        %1308 = vmatprep.subr.mxu0 0.0
        %1309 = vmatpush1.msra.mxu0 0.0
        %1310 = vmatprep.subr.mxu0 0.0
        %1311 = vmatpush1.msra.mxu0 0.0
        %1312 = vmatprep.subr.mxu0 0.0
        %1313 = vmatpush1.msra.mxu0 0.0
        %1314 = vmatprep.subr.mxu0 0.0
        %1315 = vmatpush1.msra.mxu0 0.0
        %1316 = vmatprep.subr.mxu0 0.0
        %1317 = vmatpush1.msra.mxu0 0.0
        %1318 = vmatprep.subr.mxu0 0.0
        %1319 = vmatpush1.msra.mxu0 0.0
        %1320 = vmatprep.subr.mxu0 0.0
        %1321 = vmatpush1.msra.mxu0 0.0
        %1322 = vmatprep.subr.mxu0 0.0
        %1323 = vmatpush1.msra.mxu0 0.0
        %1324 = vmatprep.subr.mxu0 0.0
        %1325 = vmatpush1.msra.mxu0 0.0
        %1326 = vmatprep.subr.mxu0 0.0
        %1327 = vmatpush1.msra.mxu0 0.0
        %1328 = vmatprep.subr.mxu0 0.0
        %1329 = vmatpush1.msra.mxu0 0.0
        %1330 = vmatprep.subr.mxu0 0.0
        %1331 = vmatpush1.msra.mxu0 0.0
        %1332 = vmatprep.subr.mxu0 0.0
        %1333 = vmatpush1.msra.mxu0 0.0
        %1334 = vmatprep.subr.mxu0 0.0
        %1335 = vmatpush1.msra.mxu0 0.0
        %1336 = vmatprep.subr.mxu0 0.0
        %1337 = vmatpush1.msra.mxu0 0.0
        %1338 = vmatprep.subr.mxu0 0.0
        %1339 = vmatpush1.msra.mxu0 0.0
        %1340 = vmatprep.subr.mxu0 0.0
        %1341 = vmatpush1.msra.mxu0 0.0
        %1342 = vmatprep.subr.mxu0 0.0
        %1343 = vmatpush1.msra.mxu0 0.0
        %1344 = vmatprep.subr.mxu0 0.0
        %1345 = vmatpush1.msra.mxu0 0.0
        %1346 = vmatprep.subr.mxu0 0.0
        %1347 = vmatpush1.msra.mxu0 0.0
        %1348 = vmatprep.subr.mxu0 0.0
        %1349 = vmatpush1.msra.mxu0 0.0
        %1350 = vmatprep.subr.mxu0 0.0
        %1351 = vmatpush1.msra.mxu0 0.0
        %1352 = vmatprep.subr.mxu0 0.0
        %1353 = vmatpush1.msra.mxu0 0.0
        %1354 = vmatprep.subr.mxu0 0.0
        %1355 = vmatpush1.msra.mxu0 0.0
        %1356 = vmatprep.subr.mxu0 0.0
        %1357 = vmatpush1.msra.mxu0 0.0
        %1358 = vmatprep.subr.mxu0 0.0
        %1359 = vmatpush1.msra.mxu0 0.0
        %1360 = vmatprep.subr.mxu0 0.0
        %1361 = vmatpush1.msra.mxu0 0.0
        %1362 = vmatprep.mubr.f32.mxu0 0.0
        %1363 = vmatmul.mubr.f32.gmra.mrb[0].mxu0 %v1296
        %v1364 = vpop.f32.mrb[0].mxu0
        %v1365 = vadd.f32 %v1293, %v1364
        %v1366 = vpop.f32.mrb[0].mxu0
        %1367 = vdwg.mxu0
        %v1368 = vmax.f32 %v1365, 0.0
        %v1369 = vld [vmem:[#allocation13] sm:$0xff]
        %v1370 = vld [vmem:[#allocation13 + $0x8] sm:$0xff]
        %v1371 = vld [vmem:[#allocation13 + $0x10] sm:$0xff]
        %v1372 = vld [vmem:[#allocation13 + $0x18] sm:$0xff]
        %v1373 = vld [vmem:[#allocation13 + $0x20] sm:$0xff]
        %v1374 = vld [vmem:[#allocation13 + $0x28] sm:$0xff]
        %v1375 = vld [vmem:[#allocation13 + $0x30] sm:$0xff]
        %v1376 = vld [vmem:[#allocation13 + $0x38] sm:$0xff]
        %v1377 = vld [vmem:[#allocation13 + $0x40] sm:$0xff]
        %v1378 = vld [vmem:[#allocation13 + $0x48] sm:$0xff]
        %v1379 = vld [vmem:[#allocation13 + $0x50] sm:$0xff]
        %v1380 = vld [vmem:[#allocation13 + $0x58] sm:$0xff]
        %v1381 = vld [vmem:[#allocation13 + $0x60] sm:$0xff]
        %v1382 = vld [vmem:[#allocation13 + $0x68] sm:$0xff]
        %v1383 = vld [vmem:[#allocation13 + $0x70] sm:$0xff]
        %v1384 = vld [vmem:[#allocation13 + $0x78] sm:$0xff]
        %v1385 = vld [vmem:[#allocation14] sm:$0x1]
        %v1387 = vlaneseq
        %v1388 = vshrl.u32 %v1387, 7
        %v1389 = vsub.s32 0, %v1388
        %v1390 = vrot.slane %v1385, %v1389
        %1392 = vmatprep.subr.mxu0 0.0
        %1393 = vmatpush1.msra.mxu0 %v1369
        %1394 = vmatprep.subr.mxu0 0.0
        %1395 = vmatpush1.msra.mxu0 %v1370
        %1396 = vmatprep.subr.mxu0 0.0
        %1397 = vmatpush1.msra.mxu0 %v1371
        %1398 = vmatprep.subr.mxu0 0.0
        %1399 = vmatpush1.msra.mxu0 %v1372
        %1400 = vmatprep.subr.mxu0 0.0
        %1401 = vmatpush1.msra.mxu0 %v1373
        %1402 = vmatprep.subr.mxu0 0.0
        %1403 = vmatpush1.msra.mxu0 %v1374
        %1404 = vmatprep.subr.mxu0 0.0
        %1405 = vmatpush1.msra.mxu0 %v1375
        %1406 = vmatprep.subr.mxu0 0.0
        %1407 = vmatpush1.msra.mxu0 %v1376
        %1408 = vmatprep.subr.mxu0 0.0
        %1409 = vmatpush1.msra.mxu0 %v1377
        %1410 = vmatprep.subr.mxu0 0.0
        %1411 = vmatpush1.msra.mxu0 %v1378
        %1412 = vmatprep.subr.mxu0 0.0
        %1413 = vmatpush1.msra.mxu0 %v1379
        %1414 = vmatprep.subr.mxu0 0.0
        %1415 = vmatpush1.msra.mxu0 %v1380
        %1416 = vmatprep.subr.mxu0 0.0
        %1417 = vmatpush1.msra.mxu0 %v1381
        %1418 = vmatprep.subr.mxu0 0.0
        %1419 = vmatpush1.msra.mxu0 %v1382
        %1420 = vmatprep.subr.mxu0 0.0
        %1421 = vmatpush1.msra.mxu0 %v1383
        %1422 = vmatprep.subr.mxu0 0.0
        %1423 = vmatpush1.msra.mxu0 %v1384
        %1424 = vmatprep.subr.mxu0 0.0
        %1425 = vmatpush1.msra.mxu0 0.0
        %1426 = vmatprep.subr.mxu0 0.0
        %1427 = vmatpush1.msra.mxu0 0.0
        %1428 = vmatprep.subr.mxu0 0.0
        %1429 = vmatpush1.msra.mxu0 0.0
        %1430 = vmatprep.subr.mxu0 0.0
        %1431 = vmatpush1.msra.mxu0 0.0
        %1432 = vmatprep.subr.mxu0 0.0
        %1433 = vmatpush1.msra.mxu0 0.0
        %1434 = vmatprep.subr.mxu0 0.0
        %1435 = vmatpush1.msra.mxu0 0.0
        %1436 = vmatprep.subr.mxu0 0.0
        %1437 = vmatpush1.msra.mxu0 0.0
        %1438 = vmatprep.subr.mxu0 0.0
        %1439 = vmatpush1.msra.mxu0 0.0
        %1440 = vmatprep.subr.mxu0 0.0
        %1441 = vmatpush1.msra.mxu0 0.0
        %1442 = vmatprep.subr.mxu0 0.0
        %1443 = vmatpush1.msra.mxu0 0.0
        %1444 = vmatprep.subr.mxu0 0.0
        %1445 = vmatpush1.msra.mxu0 0.0
        %1446 = vmatprep.subr.mxu0 0.0
        %1447 = vmatpush1.msra.mxu0 0.0
        %1448 = vmatprep.subr.mxu0 0.0
        %1449 = vmatpush1.msra.mxu0 0.0
        %1450 = vmatprep.subr.mxu0 0.0
        %1451 = vmatpush1.msra.mxu0 0.0
        %1452 = vmatprep.subr.mxu0 0.0
        %1453 = vmatpush1.msra.mxu0 0.0
        %1454 = vmatprep.subr.mxu0 0.0
        %1455 = vmatpush1.msra.mxu0 0.0
        %1456 = vmatprep.mubr.f32.mxu0 0.0
        %1457 = vmatmul.mubr.f32.gmra.mrb[0].mxu0 %v1368
        %v1458 = vpop.f32.mrb[0].mxu0
        %v1459 = vadd.f32 %v1390, %v1458
        %v1460 = vpop.f32.mrb[0].mxu0
        %1461 = vdwg.mxu0
        %v1462 = vadd.f32 %v1276, %v1459
        %1463 = vst.msk [vmem:[%s416] sm:$0xff] %vm419, %v1462
        %s1464 = sand.u32 %s210, 1
        %s1465 = scalar_lea.sflag [#allocation4], %s1464
        %s1466 = sand.u32 %s210, 1
        %s1467 = smul.addr %s1466, 8
        %s1468 = scalar_lea.vmem [#allocation16], %s1467
        // Predicated region
        $region85: #{tpu_custom_call.1} parent=51 // pred_check
          %p1469 = pneg %p220
        $region86: #{tpu_custom_call.1} parent=51 // pred_check_branch
          %1471 = sbr.rel (%p1469) target = $region88
        $region87: #{tpu_custom_call.1} parent=51 // pred_region
          %s1473 = ssub.s32 128, 128
          %1474 = vsyncadd %s1465, %s1473
          %s1475 = smul.addr %s29, 128
          %s1476 = scalar_lea.hbm %s8, %s1475
          %s1478 = sshll.u32 %s1468, 4
          %s1479 = int_to_ptr.vmem [resolvable:$true] %s1478
          %1481 = dma.vmem_to_hbm [thread:$0]  %s1479, 128, %s1476, %s1465
        $region88: #{tpu_custom_call.1} parent=51 // pred_fallthru
          _
      $region52: #{tpu_custom_call.1} parent=5 // pred_fallthru
        _
      %p1482 = scmp.le.s32.totalorder 2, %s24
      // Predicated region
      $region89: #{tpu_custom_call.1} parent=5 // pred_check
        %p1483 = pneg %p1482
      $region90: #{tpu_custom_call.1} parent=5 // pred_check_branch
        %1485 = sbr.rel (%p1483) target = $region92
      $region91: #{tpu_custom_call.1} parent=5 // pred_region
        %s1486 = ssub.s32 %s24, 2
        // Predicated region
        $region93: #{tpu_custom_call.1} parent=91 // pred_check
          %p1487 = pneg %p226
        $region94: #{tpu_custom_call.1} parent=91 // pred_check_branch
          %1489 = sbr.rel (%p1487) target = $region96
        $region95: #{tpu_custom_call.1} parent=91 // pred_region
          %s1490 = sand.u32 %s211, 1
          %s1491 = scalar_lea.sflag [#allocation4], %s1490
          %s1492 = sand.u32 %s211, 1
          %s1493 = smul.addr %s1492, 8
          %s1494 = scalar_lea.vmem [#allocation16], %s1493
          %1495 = dma.done %s1491, 128
        $region96: #{tpu_custom_call.1} parent=91 // pred_fallthru
          _
      $region92: #{tpu_custom_call.1} parent=5 // pred_fallthru
        _
    $region6: #{tpu_custom_call.1} parent=1 // loop_footer
      %s28 = sadd.s32 1, %s24
    $region7: #{tpu_custom_call.1} parent=1 // loop_footer_branch
      %23 = sbr.rel target = $region3
    $region8: #{tpu_custom_call.1} parent=1 // loop_exit
      _
    %1496 = vsyncpa [#allocation3], 1
    %s1497 = scalar_lea.sflag [#allocation3], 1
    %1498 = vsyncpa %s1497, 1
    %1499 = vsyncpa [#allocation6], 1
    %1500 = vsyncpa [#allocation9], 1
    %1501 = vsyncpa [#allocation12], 1
    %1502 = vsyncpa [#allocation15], 1
    %1503 = vsyncpa [#allocation4], 1
    %s1504 = scalar_lea.sflag [#allocation4], 1
    %1505 = vsyncpa %s1504, 1

</llo_original>
